<compile_context>
chip_gen: v7x
topology: tpu7x:2x2x1
jax: 0.10.0
libtpu: 0.0.40
codegen_flags: <defaults>
</compile_context>

<pallas_src>
import functools
import math

import jax
import jax.numpy as jnp
from jax.experimental import pallas as pl
from jax.experimental.pallas import tpu as pltpu


# ---------------------------------------------------------------------------
# fp32 helpers (used both in-kernel and in the pure-JAX reference)
# ---------------------------------------------------------------------------
def _layernorm(v, gamma, beta, eps=1e-5):
    mu = jnp.mean(v, axis=-1, keepdims=True)
    var = jnp.mean((v - mu) ** 2, axis=-1, keepdims=True)
    return (v - mu) * jax.lax.rsqrt(var + eps) * gamma + beta


def _gelu_tanh(x):
    # GELU(approximate=True) from the PyTorch module
    c = math.sqrt(2.0 / math.pi)
    return x * 0.5 * (1.0 + jnp.tanh(c * (x + 0.044715 * x * x * x)))


# ---------------------------------------------------------------------------
# Fused encoder-stack kernel
# ---------------------------------------------------------------------------
def encoder_stack_kernel(x_ref,
                         ln1_g, ln1_b, wqkv, bqkv, wout, bout,
                         ln2_g, ln2_b, w1, b1, w2, b2,
                         fin_g, fin_b,
                         o_ref,
                         ctx_ref,
                         *, heads):
    """Grid = (batch, depth). o_ref is the resident residual stream across depth.

    Kernel views (batch / depth dims squeezed away by BlockSpec):
      x_ref / o_ref : (N, C) fp32
      wqkv (C,3C) wout (C,C) w1 (C,M) w2 (M,C)      -- bf16
      biases / LN params : (1, X)                   -- fp32
      ctx_ref : (N, C) fp32 VMEM scratch (per-head context assembly)
    """
    d = pl.program_id(1)
    n_layers = pl.num_programs(1)
    bf16 = jnp.bfloat16

    # Load the residual stream into the resident output block at the first layer.
    @pl.when(d == 0)
    def _init():
        o_ref[...] = x_ref[...]

    x = o_ref[...]                                   # (N, C) fp32
    N, C = x.shape
    dh = C // heads
    scale = dh ** (-0.5)

    # ----- pre-norm + multi-head attention --------------------------------
    xn = _layernorm(x, ln1_g[...], ln1_b[...])
    qkv = jnp.dot(xn.astype(bf16), wqkv[...],
                  preferred_element_type=jnp.float32) + bqkv[...]   # (N, 3C) fp32
    qkv_b = qkv.astype(bf16)

    # Per-head 2-D dots: contraction over the trailing head dim keeps operands
    # lane-dense; context is written into a lane-dense (N, C) scratch.
    for h in range(heads):
        q_h = qkv_b[:, h * dh:(h + 1) * dh]                          # (N, dh)
        k_h = qkv_b[:, C + h * dh:C + (h + 1) * dh]                  # (N, dh)
        v_h = qkv_b[:, 2 * C + h * dh:2 * C + (h + 1) * dh]          # (N, dh)

        s = jax.lax.dot_general(q_h, k_h, (((1,), (1,)), ((), ())),
                                preferred_element_type=jnp.float32) * scale
        s = s - jnp.max(s, axis=-1, keepdims=True)
        p = jnp.exp(s)
        p = p * pl.reciprocal(jnp.sum(p, axis=-1, keepdims=True), approx=True)

        ctx_ref[:, h * dh:(h + 1) * dh] = jnp.dot(
            p.astype(bf16), v_h, preferred_element_type=jnp.float32)

    attn_out = jnp.dot(ctx_ref[...].astype(bf16), wout[...],
                       preferred_element_type=jnp.float32) + bout[...]
    x2 = x + attn_out                                 # residual (fp32)

    # ----- pre-norm + feed-forward -----------------------------------------
    yn = _layernorm(x2, ln2_g[...], ln2_b[...])
    h1 = jnp.dot(yn.astype(bf16), w1[...],
                 preferred_element_type=jnp.float32) + b1[...]
    y = jnp.dot(_gelu_tanh(h1).astype(bf16), w2[...],
                preferred_element_type=jnp.float32) + b2[...]
    res = x2 + y

    # Last layer: fuse the final encoder LayerNorm before the single HBM write.
    @pl.when(d == n_layers - 1)
    def _finalize():
        o_ref[...] = _layernorm(res, fin_g[...], fin_b[...])

    @pl.when(d < n_layers - 1)
    def _carry():
        o_ref[...] = res


# ---------------------------------------------------------------------------
# Wrapper: one pallas_call for the whole encoder stack
# ---------------------------------------------------------------------------
def encoder_forward(x, params, final_g, final_b, heads):
    B, N, C = x.shape
    D = params['wqkv'].shape[0]
    M = params['w1'].shape[2]
    bf16 = jnp.bfloat16

    def wspec(*dims):
        # depth-stacked parameter: pick layer d, squeeze the depth dim.
        return pl.BlockSpec((pl.Squeezed(),) + dims,
                            lambda b, d: (d,) + (0,) * len(dims))

    in_specs = [
        pl.BlockSpec((pl.Squeezed(), N, C), lambda b, d: (b, 0, 0)),   # x
        wspec(1, C), wspec(1, C),                                      # ln1 gamma / beta
        wspec(C, 3 * C), wspec(1, 3 * C),                              # qkv weight / bias
        wspec(C, C), wspec(1, C),                                      # out-proj weight / bias
        wspec(1, C), wspec(1, C),                                      # ln2 gamma / beta
        wspec(C, M), wspec(1, M),                                      # mlp1 weight / bias
        wspec(M, C), wspec(1, C),                                      # mlp2 weight / bias
        pl.BlockSpec((1, C), lambda b, d: (0, 0)),                     # final LN gamma
        pl.BlockSpec((1, C), lambda b, d: (0, 0)),                     # final LN beta
    ]
    out_spec = pl.BlockSpec((pl.Squeezed(), N, C), lambda b, d: (b, 0, 0))

    return pl.pallas_call(
        functools.partial(encoder_stack_kernel, heads=heads),
        out_shape=jax.ShapeDtypeStruct((B, N, C), jnp.float32),
        grid_spec=pltpu.PrefetchScalarGridSpec(
            num_scalar_prefetch=0,
            grid=(B, D),                            # depth last = sequential accumulation
            in_specs=in_specs,
            out_specs=out_spec,
            scratch_shapes=[pltpu.VMEM((N, C), jnp.float32)]),
        compiler_params=pltpu.CompilerParams(
            dimension_semantics=("parallel", "arbitrary"),
            vmem_limit_bytes=64 * 1024 * 1024),
    )(x,
      params['ln1_g'], params['ln1_b'],
      params['wqkv'].astype(bf16), params['bqkv'],
      params['wout'].astype(bf16), params['bout'],
      params['ln2_g'], params['ln2_b'],
      params['w1'].astype(bf16), params['b1'],
      params['w2'].astype(bf16), params['b2'],
      final_g, final_b)


# ---------------------------------------------------------------------------
# Pure-JAX fp32 reference (module semantics, for correctness check)
# ---------------------------------------------------------------------------
def ref_forward(x, p, final_g, final_b, heads):
    D = p['wqkv'].shape[0]
    B, N, C = x.shape
    dh = C // heads
    for d in range(D):
        xn = _layernorm(x, p['ln1_g'][d], p['ln1_b'][d])
        qkv = xn @ p['wqkv'][d] + p['bqkv'][d]
        q = qkv[..., 0 * C:1 * C].reshape(B, N, heads, dh)
        k = qkv[..., 1 * C:2 * C].reshape(B, N, heads, dh)
        v = qkv[..., 2 * C:3 * C].reshape(B, N, heads, dh)
        attn = jnp.einsum('bqhd,bkhd->bhqk', q, k) * dh ** (-0.5)
        attn = jax.nn.softmax(attn, axis=-1)
        ctx = jnp.einsum('bhqk,bkhd->bqhd', attn, v).reshape(B, N, C)
        x2 = ctx @ p['wout'][d] + p['bout'][d] + x
        yn = _layernorm(x2, p['ln2_g'][d], p['ln2_b'][d])
        y = _gelu_tanh(yn @ p['w1'][d] + p['b1'][d]) @ p['w2'][d] + p['b2'][d]
        x = x2 + y
    return _layernorm(x, final_g, final_b)


# ---------------------------------------------------------------------------
# Deterministic parameter init + run
# ---------------------------------------------------------------------------
def init_params(key, depth, C, M):
    ks = jax.random.split(key, 12)
    s = 0.02
    n = lambda k, shape: s * jax.random.normal(k, shape, jnp.float32)
    return {
        'ln1_g': 1.0 + 0.1 * jax.random.normal(ks[0], (depth, 1, C), jnp.float32),
        'ln1_b': 0.1 * jax.random.normal(ks[1], (depth, 1, C), jnp.float32),
        'wqkv': n(ks[2], (depth, C, 3 * C)),
        'bqkv': n(ks[3], (depth, 1, 3 * C)),
        'wout': n(ks[4], (depth, C, C)),
        'bout': n(ks[5], (depth, 1, C)),
        'ln2_g': 1.0 + 0.1 * jax.random.normal(ks[6], (depth, 1, C), jnp.float32),
        'ln2_b': 0.1 * jax.random.normal(ks[7], (depth, 1, C), jnp.float32),
        'w1': n(ks[8], (depth, C, M)),
        'b1': n(ks[9], (depth, 1, M)),
        'w2': n(ks[10], (depth, M, C)),
        'b2': n(ks[11], (depth, 1, C)),
    }


if __name__ == "__main__":
    # small but layout-friendly shapes: C, 3C, M multiples of 128; N multiple of 8
    B, N, C = 2, 16, 128          # batch, tokens, hidden_dim
    heads, mlp_dim, depth = 4, 256, 2

    key = jax.random.PRNGKey(0)
    kx, kp, kg, kb = jax.random.split(key, 4)
    x = jax.random.normal(kx, (B, N, C), jnp.float32)

    params = init_params(kp, depth, C, mlp_dim)
    final_g = 1.0 + 0.1 * jax.random.normal(kg, (1, C), jnp.float32)
    final_b = 0.1 * jax.random.normal(kb, (1, C), jnp.float32)

    out = encoder_forward(x, params, final_g, final_b, heads)
    out = jax.block_until_ready(out)

    ref = ref_forward(x, params, final_g, final_b, heads)
    assert out.shape == (B, N, C)
    max_err = float(jnp.max(jnp.abs(out - ref)))
    # bf16 matmul inputs (fp32 accumulate) => slightly relaxed tolerance vs fp32 reference
    assert jnp.allclose(out, ref, rtol=5e-2, atol=5e-3), f"mismatch vs ref, max_err={max_err}"

    print("KERNEL_OK")
</pallas_src>

<mosaic_0001>
module attributes {stable_mosaic.version = 11 : i64} {
  func.func @encoder_stack_kernel(%arg0: i32, %arg1: i32, %arg2: memref<1x16x128xf32, #tpu.memory_space<vmem>>, %arg3: memref<1x1x128xf32, #tpu.memory_space<vmem>>, %arg4: memref<1x1x128xf32, #tpu.memory_space<vmem>>, %arg5: memref<1x128x384xbf16, #tpu.memory_space<vmem>>, %arg6: memref<1x1x384xf32, #tpu.memory_space<vmem>>, %arg7: memref<1x128x128xbf16, #tpu.memory_space<vmem>>, %arg8: memref<1x1x128xf32, #tpu.memory_space<vmem>>, %arg9: memref<1x1x128xf32, #tpu.memory_space<vmem>>, %arg10: memref<1x1x128xf32, #tpu.memory_space<vmem>>, %arg11: memref<1x128x256xbf16, #tpu.memory_space<vmem>>, %arg12: memref<1x1x256xf32, #tpu.memory_space<vmem>>, %arg13: memref<1x256x128xbf16, #tpu.memory_space<vmem>>, %arg14: memref<1x1x128xf32, #tpu.memory_space<vmem>>, %arg15: memref<1x128xf32, #tpu.memory_space<vmem>>, %arg16: memref<1x128xf32, #tpu.memory_space<vmem>>, %arg17: memref<1x16x128xf32, #tpu.memory_space<vmem>>, %arg18: memref<16x128xf32, #tpu.memory_space<vmem>>) attributes {dimension_semantics = [#tpu.dimension_semantics<parallel>, #tpu.dimension_semantics<arbitrary>], iteration_bounds = array<i64: 2, 2>, scalar_prefetch = 0 : i64, scratch_operands = 1 : i64, tpu.core_type = #tpu.core_type<tc>, window_params = [{transform_indices = @transform_0, window_bounds = array<i64: 1, 16, 128>}, {transform_indices = @transform_1, window_bounds = array<i64: 1, 1, 128>}, {transform_indices = @transform_2, window_bounds = array<i64: 1, 1, 128>}, {transform_indices = @transform_3, window_bounds = array<i64: 1, 128, 384>}, {transform_indices = @transform_4, window_bounds = array<i64: 1, 1, 384>}, {transform_indices = @transform_5, window_bounds = array<i64: 1, 128, 128>}, {transform_indices = @transform_6, window_bounds = array<i64: 1, 1, 128>}, {transform_indices = @transform_7, window_bounds = array<i64: 1, 1, 128>}, {transform_indices = @transform_8, window_bounds = array<i64: 1, 1, 128>}, {transform_indices = @transform_9, window_bounds = array<i64: 1, 128, 256>}, {transform_indices = @transform_10, window_bounds = array<i64: 1, 1, 256>}, {transform_indices = @transform_11, window_bounds = array<i64: 1, 256, 128>}, {transform_indices = @transform_12, window_bounds = array<i64: 1, 1, 128>}, {pipeline_mode = #tpu.pipeline_mode<synchronous>, transform_indices = @transform_13, window_bounds = array<i64: 1, 128>}, {pipeline_mode = #tpu.pipeline_mode<synchronous>, transform_indices = @transform_14, window_bounds = array<i64: 1, 128>}, {transform_indices = @transform_15, window_bounds = array<i64: 1, 16, 128>}]} {
    %c0_i32 = arith.constant 0 : i32
    %0 = arith.cmpi eq, %arg1, %c0_i32 : i32
    %1 = arith.extui %0 : i1 to i32
    %c0_i32_0 = arith.constant 0 : i32
    %2 = arith.cmpi ne, %1, %c0_i32_0 : i32
    scf.if %2 {
      %c0_86 = arith.constant 0 : index
      %c0_87 = arith.constant 0 : index
      %c0_88 = arith.constant 0 : index
      %188 = vector.load %arg2[%c0_86, %c0_87, %c0_88] : memref<1x16x128xf32, #tpu.memory_space<vmem>>, vector<1x16x128xf32>
      %189 = vector.shape_cast %188 : vector<1x16x128xf32> to vector<16x128xf32>
      %c0_89 = arith.constant 0 : index
      %c0_90 = arith.constant 0 : index
      %c0_91 = arith.constant 0 : index
      %190 = vector.load %arg17[%c0_89, %c0_90, %c0_91] : memref<1x16x128xf32, #tpu.memory_space<vmem>>, vector<1x16x128xf32>
      %191 = vector.shape_cast %190 : vector<1x16x128xf32> to vector<16x128xf32>
      %192 = vector.shape_cast %189 : vector<16x128xf32> to vector<1x16x128xf32>
      tpu.vector_store %arg17[%c0_89, %c0_90, %c0_91], %192 {strides = array<i32>} : memref<1x16x128xf32, #tpu.memory_space<vmem>>, vector<1x16x128xf32>,
    } else {
    }
    %c0 = arith.constant 0 : index
    %c0_1 = arith.constant 0 : index
    %c0_2 = arith.constant 0 : index
    %3 = vector.load %arg17[%c0, %c0_1, %c0_2] : memref<1x16x128xf32, #tpu.memory_space<vmem>>, vector<1x16x128xf32>
    %4 = vector.shape_cast %3 : vector<1x16x128xf32> to vector<16x128xf32>
    %c0_3 = arith.constant 0 : index
    %c0_4 = arith.constant 0 : index
    %c0_5 = arith.constant 0 : index
    %5 = vector.load %arg3[%c0_3, %c0_4, %c0_5] : memref<1x1x128xf32, #tpu.memory_space<vmem>>, vector<1x1x128xf32>
    %6 = vector.shape_cast %5 : vector<1x1x128xf32> to vector<1x128xf32>
    %c0_6 = arith.constant 0 : index
    %c0_7 = arith.constant 0 : index
    %c0_8 = arith.constant 0 : index
    %7 = vector.load %arg4[%c0_6, %c0_7, %c0_8] : memref<1x1x128xf32, #tpu.memory_space<vmem>>, vector<1x1x128xf32>
    %8 = vector.shape_cast %7 : vector<1x1x128xf32> to vector<1x128xf32>
    %cst = arith.constant dense<0.000000e+00> : vector<16xf32>
    %9 = vector.multi_reduction <add>, %4, %cst [1] : vector<16x128xf32> to vector<16xf32>
    %10 = vector.shape_cast %9 : vector<16xf32> to vector<16x1xf32>
    %cst_9 = arith.constant 1.280000e+02 : f32
    %11 = vector.broadcast %cst_9 : f32 to vector<16x1xf32>
    %12 = arith.divf %10, %11 : vector<16x1xf32>
    %13 = vector.broadcast %12 : vector<16x1xf32> to vector<16x128xf32>
    %14 = arith.subf %4, %13 : vector<16x128xf32>
    %15 = arith.mulf %14, %14 : vector<16x128xf32>
    %cst_10 = arith.constant dense<0.000000e+00> : vector<16xf32>
    %16 = vector.multi_reduction <add>, %15, %cst_10 [1] : vector<16x128xf32> to vector<16xf32>
    %17 = vector.shape_cast %16 : vector<16xf32> to vector<16x1xf32>
    %cst_11 = arith.constant 1.280000e+02 : f32
    %18 = vector.broadcast %cst_11 : f32 to vector<16x1xf32>
    %19 = arith.divf %17, %18 : vector<16x1xf32>
    %20 = vector.broadcast %12 : vector<16x1xf32> to vector<16x128xf32>
    %21 = arith.subf %4, %20 : vector<16x128xf32>
    %cst_12 = arith.constant 9.99999974E-6 : f32
    %22 = vector.broadcast %cst_12 : f32 to vector<16x1xf32>
    %23 = arith.addf %19, %22 : vector<16x1xf32>
    %24 = math.rsqrt %23 : vector<16x1xf32>
    %25 = vector.broadcast %24 : vector<16x1xf32> to vector<16x128xf32>
    %26 = arith.mulf %21, %25 : vector<16x128xf32>
    %27 = vector.broadcast %6 : vector<1x128xf32> to vector<16x128xf32>
    %28 = arith.mulf %26, %27 : vector<16x128xf32>
    %29 = vector.broadcast %8 : vector<1x128xf32> to vector<16x128xf32>
    %30 = arith.addf %28, %29 : vector<16x128xf32>
    %31 = arith.truncf %30 : vector<16x128xf32> to vector<16x128xbf16>
    %c0_13 = arith.constant 0 : index
    %c0_14 = arith.constant 0 : index
    %c0_15 = arith.constant 0 : index
    %32 = vector.load %arg5[%c0_13, %c0_14, %c0_15] : memref<1x128x384xbf16, #tpu.memory_space<vmem>>, vector<1x128x384xbf16>
    %33 = vector.shape_cast %32 : vector<1x128x384xbf16> to vector<128x384xbf16>
    %cst_16 = arith.constant dense<0.000000e+00> : vector<16x384xf32>
    %34 = tpu.matmul %31, %33, %cst_16 {dimension_numbers = #tpu.dot_dimension_numbers<[1], [0], [0], [1], [0, 0, 1, 1], [], []>} : vector<16x128xbf16>, vector<128x384xbf16>, vector<16x384xf32> -> vector<16x384xf32>
    %c0_17 = arith.constant 0 : index
    %c0_18 = arith.constant 0 : index
    %c0_19 = arith.constant 0 : index
    %35 = vector.load %arg6[%c0_17, %c0_18, %c0_19] : memref<1x1x384xf32, #tpu.memory_space<vmem>>, vector<1x1x384xf32>
    %36 = vector.shape_cast %35 : vector<1x1x384xf32> to vector<1x384xf32>
    %37 = vector.broadcast %36 : vector<1x384xf32> to vector<16x384xf32>
    %38 = arith.addf %34, %37 : vector<16x384xf32>
    %39 = arith.truncf %38 : vector<16x384xf32> to vector<16x384xbf16>
    %40 = vector.extract_strided_slice %39 {offsets = [0, 0], sizes = [16, 32], strides = [1, 1]} : vector<16x384xbf16> to vector<16x32xbf16>
    %41 = vector.extract_strided_slice %39 {offsets = [0, 128], sizes = [16, 32], strides = [1, 1]} : vector<16x384xbf16> to vector<16x32xbf16>
    %42 = vector.extract_strided_slice %39 {offsets = [0, 256], sizes = [16, 32], strides = [1, 1]} : vector<16x384xbf16> to vector<16x32xbf16>
    %cst_20 = arith.constant dense<0.000000e+00> : vector<16x16xf32>
    %43 = tpu.matmul %40, %41, %cst_20 {dimension_numbers = #tpu.dot_dimension_numbers<[1], [1], [0], [0], [0, 0, 1, 0], [], []>} : vector<16x32xbf16>, vector<16x32xbf16>, vector<16x16xf32> -> vector<16x16xf32>
    %cst_21 = arith.constant 0.176776692 : f32
    %44 = vector.broadcast %cst_21 : f32 to vector<16x16xf32>
    %45 = arith.mulf %43, %44 : vector<16x16xf32>
    %cst_22 = arith.constant dense<0xFF800000> : vector<16xf32>
    %46 = vector.multi_reduction <maximumf>, %45, %cst_22 [1] : vector<16x16xf32> to vector<16xf32>
    %47 = vector.shape_cast %46 : vector<16xf32> to vector<16x1xf32>
    %48 = vector.broadcast %47 : vector<16x1xf32> to vector<16x16xf32>
    %49 = arith.subf %45, %48 : vector<16x16xf32>
    %50 = math.exp %49 : vector<16x16xf32>
    %cst_23 = arith.constant dense<0.000000e+00> : vector<16xf32>
    %51 = vector.multi_reduction <add>, %50, %cst_23 [1] : vector<16x16xf32> to vector<16xf32>
    %52 = vector.shape_cast %51 : vector<16xf32> to vector<16x1xf32>
    %53 = tpu.reciprocal %52 {approx = true} : vector<16x1xf32> -> vector<16x1xf32>
    %54 = vector.broadcast %53 : vector<16x1xf32> to vector<16x16xf32>
    %55 = arith.mulf %50, %54 : vector<16x16xf32>
    %56 = arith.truncf %55 : vector<16x16xf32> to vector<16x16xbf16>
    %cst_24 = arith.constant dense<0.000000e+00> : vector<16x32xf32>
    %57 = tpu.matmul %56, %42, %cst_24 {dimension_numbers = #tpu.dot_dimension_numbers<[1], [0], [0], [1], [0, 0, 1, 1], [], []>} : vector<16x16xbf16>, vector<16x32xbf16>, vector<16x32xf32> -> vector<16x32xf32>
    %c0_25 = arith.constant 0 : index
    %c0_26 = arith.constant 0 : index
    %58 = vector.load %arg18[%c0_25, %c0_26] : memref<16x128xf32, #tpu.memory_space<vmem>>, vector<16x32xf32>
    tpu.vector_store %arg18[%c0_25, %c0_26], %57 {strides = array<i32>} : memref<16x128xf32, #tpu.memory_space<vmem>>, vector<16x32xf32>,
    %59 = vector.extract_strided_slice %39 {offsets = [0, 32], sizes = [16, 32], strides = [1, 1]} : vector<16x384xbf16> to vector<16x32xbf16>
    %60 = vector.extract_strided_slice %39 {offsets = [0, 160], sizes = [16, 32], strides = [1, 1]} : vector<16x384xbf16> to vector<16x32xbf16>
    %61 = vector.extract_strided_slice %39 {offsets = [0, 288], sizes = [16, 32], strides = [1, 1]} : vector<16x384xbf16> to vector<16x32xbf16>
    %cst_27 = arith.constant dense<0.000000e+00> : vector<16x16xf32>
    %62 = tpu.matmul %59, %60, %cst_27 {dimension_numbers = #tpu.dot_dimension_numbers<[1], [1], [0], [0], [0, 0, 1, 0], [], []>} : vector<16x32xbf16>, vector<16x32xbf16>, vector<16x16xf32> -> vector<16x16xf32>
    %cst_28 = arith.constant 0.176776692 : f32
    %63 = vector.broadcast %cst_28 : f32 to vector<16x16xf32>
    %64 = arith.mulf %62, %63 : vector<16x16xf32>
    %cst_29 = arith.constant dense<0xFF800000> : vector<16xf32>
    %65 = vector.multi_reduction <maximumf>, %64, %cst_29 [1] : vector<16x16xf32> to vector<16xf32>
    %66 = vector.shape_cast %65 : vector<16xf32> to vector<16x1xf32>
    %67 = vector.broadcast %66 : vector<16x1xf32> to vector<16x16xf32>
    %68 = arith.subf %64, %67 : vector<16x16xf32>
    %69 = math.exp %68 : vector<16x16xf32>
    %cst_30 = arith.constant dense<0.000000e+00> : vector<16xf32>
    %70 = vector.multi_reduction <add>, %69, %cst_30 [1] : vector<16x16xf32> to vector<16xf32>
    %71 = vector.shape_cast %70 : vector<16xf32> to vector<16x1xf32>
    %72 = tpu.reciprocal %71 {approx = true} : vector<16x1xf32> -> vector<16x1xf32>
    %73 = vector.broadcast %72 : vector<16x1xf32> to vector<16x16xf32>
    %74 = arith.mulf %69, %73 : vector<16x16xf32>
    %75 = arith.truncf %74 : vector<16x16xf32> to vector<16x16xbf16>
    %cst_31 = arith.constant dense<0.000000e+00> : vector<16x32xf32>
    %76 = tpu.matmul %75, %61, %cst_31 {dimension_numbers = #tpu.dot_dimension_numbers<[1], [0], [0], [1], [0, 0, 1, 1], [], []>} : vector<16x16xbf16>, vector<16x32xbf16>, vector<16x32xf32> -> vector<16x32xf32>
    %c0_32 = arith.constant 0 : index
    %c32 = arith.constant 32 : index
    %77 = vector.load %arg18[%c0_32, %c32] : memref<16x128xf32, #tpu.memory_space<vmem>>, vector<16x32xf32>
    tpu.vector_store %arg18[%c0_32, %c32], %76 {strides = array<i32>} : memref<16x128xf32, #tpu.memory_space<vmem>>, vector<16x32xf32>,
    %78 = vector.extract_strided_slice %39 {offsets = [0, 64], sizes = [16, 32], strides = [1, 1]} : vector<16x384xbf16> to vector<16x32xbf16>
    %79 = vector.extract_strided_slice %39 {offsets = [0, 192], sizes = [16, 32], strides = [1, 1]} : vector<16x384xbf16> to vector<16x32xbf16>
    %80 = vector.extract_strided_slice %39 {offsets = [0, 320], sizes = [16, 32], strides = [1, 1]} : vector<16x384xbf16> to vector<16x32xbf16>
    %cst_33 = arith.constant dense<0.000000e+00> : vector<16x16xf32>
    %81 = tpu.matmul %78, %79, %cst_33 {dimension_numbers = #tpu.dot_dimension_numbers<[1], [1], [0], [0], [0, 0, 1, 0], [], []>} : vector<16x32xbf16>, vector<16x32xbf16>, vector<16x16xf32> -> vector<16x16xf32>
    %cst_34 = arith.constant 0.176776692 : f32
    %82 = vector.broadcast %cst_34 : f32 to vector<16x16xf32>
    %83 = arith.mulf %81, %82 : vector<16x16xf32>
    %cst_35 = arith.constant dense<0xFF800000> : vector<16xf32>
    %84 = vector.multi_reduction <maximumf>, %83, %cst_35 [1] : vector<16x16xf32> to vector<16xf32>
    %85 = vector.shape_cast %84 : vector<16xf32> to vector<16x1xf32>
    %86 = vector.broadcast %85 : vector<16x1xf32> to vector<16x16xf32>
    %87 = arith.subf %83, %86 : vector<16x16xf32>
    %88 = math.exp %87 : vector<16x16xf32>
    %cst_36 = arith.constant dense<0.000000e+00> : vector<16xf32>
    %89 = vector.multi_reduction <add>, %88, %cst_36 [1] : vector<16x16xf32> to vector<16xf32>
    %90 = vector.shape_cast %89 : vector<16xf32> to vector<16x1xf32>
    %91 = tpu.reciprocal %90 {approx = true} : vector<16x1xf32> -> vector<16x1xf32>
    %92 = vector.broadcast %91 : vector<16x1xf32> to vector<16x16xf32>
    %93 = arith.mulf %88, %92 : vector<16x16xf32>
    %94 = arith.truncf %93 : vector<16x16xf32> to vector<16x16xbf16>
    %cst_37 = arith.constant dense<0.000000e+00> : vector<16x32xf32>
    %95 = tpu.matmul %94, %80, %cst_37 {dimension_numbers = #tpu.dot_dimension_numbers<[1], [0], [0], [1], [0, 0, 1, 1], [], []>} : vector<16x16xbf16>, vector<16x32xbf16>, vector<16x32xf32> -> vector<16x32xf32>
    %c0_38 = arith.constant 0 : index
    %c64 = arith.constant 64 : index
    %96 = vector.load %arg18[%c0_38, %c64] : memref<16x128xf32, #tpu.memory_space<vmem>>, vector<16x32xf32>
    tpu.vector_store %arg18[%c0_38, %c64], %95 {strides = array<i32>} : memref<16x128xf32, #tpu.memory_space<vmem>>, vector<16x32xf32>,
    %97 = vector.extract_strided_slice %39 {offsets = [0, 96], sizes = [16, 32], strides = [1, 1]} : vector<16x384xbf16> to vector<16x32xbf16>
    %98 = vector.extract_strided_slice %39 {offsets = [0, 224], sizes = [16, 32], strides = [1, 1]} : vector<16x384xbf16> to vector<16x32xbf16>
    %99 = vector.extract_strided_slice %39 {offsets = [0, 352], sizes = [16, 32], strides = [1, 1]} : vector<16x384xbf16> to vector<16x32xbf16>
    %cst_39 = arith.constant dense<0.000000e+00> : vector<16x16xf32>
    %100 = tpu.matmul %97, %98, %cst_39 {dimension_numbers = #tpu.dot_dimension_numbers<[1], [1], [0], [0], [0, 0, 1, 0], [], []>} : vector<16x32xbf16>, vector<16x32xbf16>, vector<16x16xf32> -> vector<16x16xf32>
    %cst_40 = arith.constant 0.176776692 : f32
    %101 = vector.broadcast %cst_40 : f32 to vector<16x16xf32>
    %102 = arith.mulf %100, %101 : vector<16x16xf32>
    %cst_41 = arith.constant dense<0xFF800000> : vector<16xf32>
    %103 = vector.multi_reduction <maximumf>, %102, %cst_41 [1] : vector<16x16xf32> to vector<16xf32>
    %104 = vector.shape_cast %103 : vector<16xf32> to vector<16x1xf32>
    %105 = vector.broadcast %104 : vector<16x1xf32> to vector<16x16xf32>
    %106 = arith.subf %102, %105 : vector<16x16xf32>
    %107 = math.exp %106 : vector<16x16xf32>
    %cst_42 = arith.constant dense<0.000000e+00> : vector<16xf32>
    %108 = vector.multi_reduction <add>, %107, %cst_42 [1] : vector<16x16xf32> to vector<16xf32>
    %109 = vector.shape_cast %108 : vector<16xf32> to vector<16x1xf32>
    %110 = tpu.reciprocal %109 {approx = true} : vector<16x1xf32> -> vector<16x1xf32>
    %111 = vector.broadcast %110 : vector<16x1xf32> to vector<16x16xf32>
    %112 = arith.mulf %107, %111 : vector<16x16xf32>
    %113 = arith.truncf %112 : vector<16x16xf32> to vector<16x16xbf16>
    %cst_43 = arith.constant dense<0.000000e+00> : vector<16x32xf32>
    %114 = tpu.matmul %113, %99, %cst_43 {dimension_numbers = #tpu.dot_dimension_numbers<[1], [0], [0], [1], [0, 0, 1, 1], [], []>} : vector<16x16xbf16>, vector<16x32xbf16>, vector<16x32xf32> -> vector<16x32xf32>
    %c0_44 = arith.constant 0 : index
    %c96 = arith.constant 96 : index
    %115 = vector.load %arg18[%c0_44, %c96] : memref<16x128xf32, #tpu.memory_space<vmem>>, vector<16x32xf32>
    tpu.vector_store %arg18[%c0_44, %c96], %114 {strides = array<i32>} : memref<16x128xf32, #tpu.memory_space<vmem>>, vector<16x32xf32>,
    %c0_45 = arith.constant 0 : index
    %c0_46 = arith.constant 0 : index
    %116 = vector.load %arg18[%c0_45, %c0_46] : memref<16x128xf32, #tpu.memory_space<vmem>>, vector<16x128xf32>
    %117 = arith.truncf %116 : vector<16x128xf32> to vector<16x128xbf16>
    %c0_47 = arith.constant 0 : index
    %c0_48 = arith.constant 0 : index
    %c0_49 = arith.constant 0 : index
    %118 = vector.load %arg7[%c0_47, %c0_48, %c0_49] : memref<1x128x128xbf16, #tpu.memory_space<vmem>>, vector<1x128x128xbf16>
    %119 = vector.shape_cast %118 : vector<1x128x128xbf16> to vector<128x128xbf16>
    %cst_50 = arith.constant dense<0.000000e+00> : vector<16x128xf32>
    %120 = tpu.matmul %117, %119, %cst_50 {dimension_numbers = #tpu.dot_dimension_numbers<[1], [0], [0], [1], [0, 0, 1, 1], [], []>} : vector<16x128xbf16>, vector<128x128xbf16>, vector<16x128xf32> -> vector<16x128xf32>
    %c0_51 = arith.constant 0 : index
    %c0_52 = arith.constant 0 : index
    %c0_53 = arith.constant 0 : index
    %121 = vector.load %arg8[%c0_51, %c0_52, %c0_53] : memref<1x1x128xf32, #tpu.memory_space<vmem>>, vector<1x1x128xf32>
    %122 = vector.shape_cast %121 : vector<1x1x128xf32> to vector<1x128xf32>
    %123 = vector.broadcast %122 : vector<1x128xf32> to vector<16x128xf32>
    %124 = arith.addf %120, %123 : vector<16x128xf32>
    %125 = arith.addf %4, %124 : vector<16x128xf32>
    %c0_54 = arith.constant 0 : index
    %c0_55 = arith.constant 0 : index
    %c0_56 = arith.constant 0 : index
    %126 = vector.load %arg9[%c0_54, %c0_55, %c0_56] : memref<1x1x128xf32, #tpu.memory_space<vmem>>, vector<1x1x128xf32>
    %127 = vector.shape_cast %126 : vector<1x1x128xf32> to vector<1x128xf32>
    %c0_57 = arith.constant 0 : index
    %c0_58 = arith.constant 0 : index
    %c0_59 = arith.constant 0 : index
    %128 = vector.load %arg10[%c0_57, %c0_58, %c0_59] : memref<1x1x128xf32, #tpu.memory_space<vmem>>, vector<1x1x128xf32>
    %129 = vector.shape_cast %128 : vector<1x1x128xf32> to vector<1x128xf32>
    %cst_60 = arith.constant dense<0.000000e+00> : vector<16xf32>
    %130 = vector.multi_reduction <add>, %125, %cst_60 [1] : vector<16x128xf32> to vector<16xf32>
    %131 = vector.shape_cast %130 : vector<16xf32> to vector<16x1xf32>
    %cst_61 = arith.constant 1.280000e+02 : f32
    %132 = vector.broadcast %cst_61 : f32 to vector<16x1xf32>
    %133 = arith.divf %131, %132 : vector<16x1xf32>
    %134 = vector.broadcast %133 : vector<16x1xf32> to vector<16x128xf32>
    %135 = arith.subf %125, %134 : vector<16x128xf32>
    %136 = arith.mulf %135, %135 : vector<16x128xf32>
    %cst_62 = arith.constant dense<0.000000e+00> : vector<16xf32>
    %137 = vector.multi_reduction <add>, %136, %cst_62 [1] : vector<16x128xf32> to vector<16xf32>
    %138 = vector.shape_cast %137 : vector<16xf32> to vector<16x1xf32>
    %cst_63 = arith.constant 1.280000e+02 : f32
    %139 = vector.broadcast %cst_63 : f32 to vector<16x1xf32>
    %140 = arith.divf %138, %139 : vector<16x1xf32>
    %141 = vector.broadcast %133 : vector<16x1xf32> to vector<16x128xf32>
    %142 = arith.subf %125, %141 : vector<16x128xf32>
    %cst_64 = arith.constant 9.99999974E-6 : f32
    %143 = vector.broadcast %cst_64 : f32 to vector<16x1xf32>
    %144 = arith.addf %140, %143 : vector<16x1xf32>
    %145 = math.rsqrt %144 : vector<16x1xf32>
    %146 = vector.broadcast %145 : vector<16x1xf32> to vector<16x128xf32>
    %147 = arith.mulf %142, %146 : vector<16x128xf32>
    %148 = vector.broadcast %127 : vector<1x128xf32> to vector<16x128xf32>
    %149 = arith.mulf %147, %148 : vector<16x128xf32>
    %150 = vector.broadcast %129 : vector<1x128xf32> to vector<16x128xf32>
    %151 = arith.addf %149, %150 : vector<16x128xf32>
    %152 = arith.truncf %151 : vector<16x128xf32> to vector<16x128xbf16>
    %c0_65 = arith.constant 0 : index
    %c0_66 = arith.constant 0 : index
    %c0_67 = arith.constant 0 : index
    %153 = vector.load %arg11[%c0_65, %c0_66, %c0_67] : memref<1x128x256xbf16, #tpu.memory_space<vmem>>, vector<1x128x256xbf16>
    %154 = vector.shape_cast %153 : vector<1x128x256xbf16> to vector<128x256xbf16>
    %cst_68 = arith.constant dense<0.000000e+00> : vector<16x256xf32>
    %155 = tpu.matmul %152, %154, %cst_68 {dimension_numbers = #tpu.dot_dimension_numbers<[1], [0], [0], [1], [0, 0, 1, 1], [], []>} : vector<16x128xbf16>, vector<128x256xbf16>, vector<16x256xf32> -> vector<16x256xf32>
    %c0_69 = arith.constant 0 : index
    %c0_70 = arith.constant 0 : index
    %c0_71 = arith.constant 0 : index
    %156 = vector.load %arg12[%c0_69, %c0_70, %c0_71] : memref<1x1x256xf32, #tpu.memory_space<vmem>>, vector<1x1x256xf32>
    %157 = vector.shape_cast %156 : vector<1x1x256xf32> to vector<1x256xf32>
    %158 = vector.broadcast %157 : vector<1x256xf32> to vector<16x256xf32>
    %159 = arith.addf %155, %158 : vector<16x256xf32>
    %cst_72 = arith.constant 5.000000e-01 : f32
    %160 = vector.broadcast %cst_72 : f32 to vector<16x256xf32>
    %161 = arith.mulf %159, %160 : vector<16x256xf32>
    %cst_73 = arith.constant 4.471500e-02 : f32
    %162 = vector.broadcast %cst_73 : f32 to vector<16x256xf32>
    %163 = arith.mulf %162, %159 : vector<16x256xf32>
    %164 = arith.mulf %163, %159 : vector<16x256xf32>
    %165 = arith.mulf %164, %159 : vector<16x256xf32>
    %166 = arith.addf %159, %165 : vector<16x256xf32>
    %cst_74 = arith.constant 0.797884583 : f32
    %167 = vector.broadcast %cst_74 : f32 to vector<16x256xf32>
    %168 = arith.mulf %167, %166 : vector<16x256xf32>
    %169 = math.tanh %168 : vector<16x256xf32>
    %cst_75 = arith.constant 1.000000e+00 : f32
    %170 = vector.broadcast %cst_75 : f32 to vector<16x256xf32>
    %171 = arith.addf %170, %169 : vector<16x256xf32>
    %172 = arith.mulf %161, %171 : vector<16x256xf32>
    %173 = arith.truncf %172 : vector<16x256xf32> to vector<16x256xbf16>
    %c0_76 = arith.constant 0 : index
    %c0_77 = arith.constant 0 : index
    %c0_78 = arith.constant 0 : index
    %174 = vector.load %arg13[%c0_76, %c0_77, %c0_78] : memref<1x256x128xbf16, #tpu.memory_space<vmem>>, vector<1x256x128xbf16>
    %175 = vector.shape_cast %174 : vector<1x256x128xbf16> to vector<256x128xbf16>
    %cst_79 = arith.constant dense<0.000000e+00> : vector<16x128xf32>
    %176 = tpu.matmul %173, %175, %cst_79 {dimension_numbers = #tpu.dot_dimension_numbers<[1], [0], [0], [1], [0, 0, 1, 1], [], []>} : vector<16x256xbf16>, vector<256x128xbf16>, vector<16x128xf32> -> vector<16x128xf32>
    %c0_80 = arith.constant 0 : index
    %c0_81 = arith.constant 0 : index
    %c0_82 = arith.constant 0 : index
    %177 = vector.load %arg14[%c0_80, %c0_81, %c0_82] : memref<1x1x128xf32, #tpu.memory_space<vmem>>, vector<1x1x128xf32>
    %178 = vector.shape_cast %177 : vector<1x1x128xf32> to vector<1x128xf32>
    %179 = vector.broadcast %178 : vector<1x128xf32> to vector<16x128xf32>
    %180 = arith.addf %176, %179 : vector<16x128xf32>
    %181 = arith.addf %125, %180 : vector<16x128xf32>
    %c1_i32 = arith.constant 1 : i32
    %182 = arith.cmpi eq, %arg1, %c1_i32 : i32
    %183 = arith.extui %182 : i1 to i32
    %c0_i32_83 = arith.constant 0 : i32
    %184 = arith.cmpi ne, %183, %c0_i32_83 : i32
    scf.if %184 {
      %c0_86 = arith.constant 0 : index
      %c0_87 = arith.constant 0 : index
      %188 = vector.load %arg15[%c0_86, %c0_87] : memref<1x128xf32, #tpu.memory_space<vmem>>, vector<1x128xf32>
      %c0_88 = arith.constant 0 : index
      %c0_89 = arith.constant 0 : index
      %189 = vector.load %arg16[%c0_88, %c0_89] : memref<1x128xf32, #tpu.memory_space<vmem>>, vector<1x128xf32>
      %cst_90 = arith.constant dense<0.000000e+00> : vector<16xf32>
      %190 = vector.multi_reduction <add>, %181, %cst_90 [1] : vector<16x128xf32> to vector<16xf32>
      %191 = vector.shape_cast %190 : vector<16xf32> to vector<16x1xf32>
      %cst_91 = arith.constant 1.280000e+02 : f32
      %192 = vector.broadcast %cst_91 : f32 to vector<16x1xf32>
      %193 = arith.divf %191, %192 : vector<16x1xf32>
      %194 = vector.broadcast %193 : vector<16x1xf32> to vector<16x128xf32>
      %195 = arith.subf %181, %194 : vector<16x128xf32>
      %196 = arith.mulf %195, %195 : vector<16x128xf32>
      %cst_92 = arith.constant dense<0.000000e+00> : vector<16xf32>
      %197 = vector.multi_reduction <add>, %196, %cst_92 [1] : vector<16x128xf32> to vector<16xf32>
      %198 = vector.shape_cast %197 : vector<16xf32> to vector<16x1xf32>
      %cst_93 = arith.constant 1.280000e+02 : f32
      %199 = vector.broadcast %cst_93 : f32 to vector<16x1xf32>
      %200 = arith.divf %198, %199 : vector<16x1xf32>
      %201 = vector.broadcast %193 : vector<16x1xf32> to vector<16x128xf32>
      %202 = arith.subf %181, %201 : vector<16x128xf32>
      %cst_94 = arith.constant 9.99999974E-6 : f32
      %203 = vector.broadcast %cst_94 : f32 to vector<16x1xf32>
      %204 = arith.addf %200, %203 : vector<16x1xf32>
      %205 = math.rsqrt %204 : vector<16x1xf32>
      %206 = vector.broadcast %205 : vector<16x1xf32> to vector<16x128xf32>
      %207 = arith.mulf %202, %206 : vector<16x128xf32>
      %208 = vector.broadcast %188 : vector<1x128xf32> to vector<16x128xf32>
      %209 = arith.mulf %207, %208 : vector<16x128xf32>
      %210 = vector.broadcast %189 : vector<1x128xf32> to vector<16x128xf32>
      %211 = arith.addf %209, %210 : vector<16x128xf32>
      %c0_95 = arith.constant 0 : index
      %c0_96 = arith.constant 0 : index
      %c0_97 = arith.constant 0 : index
      %212 = vector.load %arg17[%c0_95, %c0_96, %c0_97] : memref<1x16x128xf32, #tpu.memory_space<vmem>>, vector<1x16x128xf32>
      %213 = vector.shape_cast %212 : vector<1x16x128xf32> to vector<16x128xf32>
      %214 = vector.shape_cast %211 : vector<16x128xf32> to vector<1x16x128xf32>
      tpu.vector_store %arg17[%c0_95, %c0_96, %c0_97], %214 {strides = array<i32>} : memref<1x16x128xf32, #tpu.memory_space<vmem>>, vector<1x16x128xf32>,
    } else {
    }
    %c1_i32_84 = arith.constant 1 : i32
    %185 = arith.cmpi slt, %arg1, %c1_i32_84 : i32
    %186 = arith.extui %185 : i1 to i32
    %c0_i32_85 = arith.constant 0 : i32
    %187 = arith.cmpi ne, %186, %c0_i32_85 : i32
    scf.if %187 {
      %c0_86 = arith.constant 0 : index
      %c0_87 = arith.constant 0 : index
      %c0_88 = arith.constant 0 : index
      %188 = vector.load %arg17[%c0_86, %c0_87, %c0_88] : memref<1x16x128xf32, #tpu.memory_space<vmem>>, vector<1x16x128xf32>
      %189 = vector.shape_cast %188 : vector<1x16x128xf32> to vector<16x128xf32>
      %190 = vector.shape_cast %181 : vector<16x128xf32> to vector<1x16x128xf32>
      tpu.vector_store %arg17[%c0_86, %c0_87, %c0_88], %190 {strides = array<i32>} : memref<1x16x128xf32, #tpu.memory_space<vmem>>, vector<1x16x128xf32>,
    } else {
    }
    return
  }
  func.func @transform_0(%arg0: i32, %arg1: i32) -> (i32, i32, i32) {
    %c0_i32 = arith.constant 0 : i32
    %c0_i32_0 = arith.constant 0 : i32
    %c0_i32_1 = arith.constant 0 : i32
    return %arg0, %c0_i32, %c0_i32_0 : i32, i32, i32
  }
  func.func @transform_1(%arg0: i32, %arg1: i32) -> (i32, i32, i32) {
    %c0_i32 = arith.constant 0 : i32
    %c0_i32_0 = arith.constant 0 : i32
    %c0_i32_1 = arith.constant 0 : i32
    return %arg1, %c0_i32, %c0_i32_0 : i32, i32, i32
  }
  func.func @transform_2(%arg0: i32, %arg1: i32) -> (i32, i32, i32) {
    %c0_i32 = arith.constant 0 : i32
    %c0_i32_0 = arith.constant 0 : i32
    %c0_i32_1 = arith.constant 0 : i32
    return %arg1, %c0_i32, %c0_i32_0 : i32, i32, i32
  }
  func.func @transform_3(%arg0: i32, %arg1: i32) -> (i32, i32, i32) {
    %c0_i32 = arith.constant 0 : i32
    %c0_i32_0 = arith.constant 0 : i32
    %c0_i32_1 = arith.constant 0 : i32
    return %arg1, %c0_i32, %c0_i32_0 : i32, i32, i32
  }
  func.func @transform_4(%arg0: i32, %arg1: i32) -> (i32, i32, i32) {
    %c0_i32 = arith.constant 0 : i32
    %c0_i32_0 = arith.constant 0 : i32
    %c0_i32_1 = arith.constant 0 : i32
    return %arg1, %c0_i32, %c0_i32_0 : i32, i32, i32
  }
  func.func @transform_5(%arg0: i32, %arg1: i32) -> (i32, i32, i32) {
    %c0_i32 = arith.constant 0 : i32
    %c0_i32_0 = arith.constant 0 : i32
    %c0_i32_1 = arith.constant 0 : i32
    return %arg1, %c0_i32, %c0_i32_0 : i32, i32, i32
  }
  func.func @transform_6(%arg0: i32, %arg1: i32) -> (i32, i32, i32) {
    %c0_i32 = arith.constant 0 : i32
    %c0_i32_0 = arith.constant 0 : i32
    %c0_i32_1 = arith.constant 0 : i32
    return %arg1, %c0_i32, %c0_i32_0 : i32, i32, i32
  }
  func.func @transform_7(%arg0: i32, %arg1: i32) -> (i32, i32, i32) {
    %c0_i32 = arith.constant 0 : i32
    %c0_i32_0 = arith.constant 0 : i32
    %c0_i32_1 = arith.constant 0 : i32
    return %arg1, %c0_i32, %c0_i32_0 : i32, i32, i32
  }
  func.func @transform_8(%arg0: i32, %arg1: i32) -> (i32, i32, i32) {
    %c0_i32 = arith.constant 0 : i32
    %c0_i32_0 = arith.constant 0 : i32
    %c0_i32_1 = arith.constant 0 : i32
    return %arg1, %c0_i32, %c0_i32_0 : i32, i32, i32
  }
  func.func @transform_9(%arg0: i32, %arg1: i32) -> (i32, i32, i32) {
    %c0_i32 = arith.constant 0 : i32
    %c0_i32_0 = arith.constant 0 : i32
    %c0_i32_1 = arith.constant 0 : i32
    return %arg1, %c0_i32, %c0_i32_0 : i32, i32, i32
  }
  func.func @transform_10(%arg0: i32, %arg1: i32) -> (i32, i32, i32) {
    %c0_i32 = arith.constant 0 : i32
    %c0_i32_0 = arith.constant 0 : i32
    %c0_i32_1 = arith.constant 0 : i32
    return %arg1, %c0_i32, %c0_i32_0 : i32, i32, i32
  }
  func.func @transform_11(%arg0: i32, %arg1: i32) -> (i32, i32, i32) {
    %c0_i32 = arith.constant 0 : i32
    %c0_i32_0 = arith.constant 0 : i32
    %c0_i32_1 = arith.constant 0 : i32
    return %arg1, %c0_i32, %c0_i32_0 : i32, i32, i32
  }
  func.func @transform_12(%arg0: i32, %arg1: i32) -> (i32, i32, i32) {
    %c0_i32 = arith.constant 0 : i32
    %c0_i32_0 = arith.constant 0 : i32
    %c0_i32_1 = arith.constant 0 : i32
    return %arg1, %c0_i32, %c0_i32_0 : i32, i32, i32
  }
  func.func @transform_13(%arg0: i32, %arg1: i32) -> (i32, i32) {
    %c0_i32 = arith.constant 0 : i32
    %c0_i32_0 = arith.constant 0 : i32
    %c0_i32_1 = arith.constant 0 : i32
    return %c0_i32, %c0_i32_0 : i32, i32
  }
  func.func @transform_14(%arg0: i32, %arg1: i32) -> (i32, i32) {
    %c0_i32 = arith.constant 0 : i32
    %c0_i32_0 = arith.constant 0 : i32
    %c0_i32_1 = arith.constant 0 : i32
    return %c0_i32, %c0_i32_0 : i32, i32
  }
  func.func @transform_15(%arg0: i32, %arg1: i32) -> (i32, i32, i32) {
    %c0_i32 = arith.constant 0 : i32
    %c0_i32_0 = arith.constant 0 : i32
    %c0_i32_1 = arith.constant 0 : i32
    return %arg0, %c0_i32, %c0_i32_0 : i32, i32, i32
  }
}

</mosaic_0001>

<llo_original>
// kernel: tpu_custom_call.1
$region0: #{tpu_custom_call.1}
  #allocation0 [shape = 'u32[]', space=smem, size = 0x4, offset = 0x4, fixed_abs, tag = 'smem constant byte address 0x4 - core index']
  #allocation1 [shape = 'u32[144,128]{1,0:T(1,128)}', space=vmem, size = 0x12000, scoped, tag = 'internal scratch']
  #allocation2 [shape = 'f32[16,128]{1,0:T(8,128)}', space=vmem, size = 0x2000, scoped, tag = 'scratch operand']
  %s0 = inlined_call_operand.hbm [shape: f32[2,16,128], index: 0, kind: input, shape index: {}]
  %s1 = inlined_call_operand.hbm [shape: f32[2,1,128], index: 1, kind: input, shape index: {}]
  %s2 = inlined_call_operand.hbm [shape: f32[2,1,128], index: 2, kind: input, shape index: {}]
  %s3 = inlined_call_operand.hbm [shape: bf16[2,128,384], index: 3, kind: input, shape index: {}]
  %s4 = inlined_call_operand.hbm [shape: f32[2,1,384], index: 4, kind: input, shape index: {}]
  %s5 = inlined_call_operand.hbm [shape: bf16[2,128,128], index: 5, kind: input, shape index: {}]
  %s6 = inlined_call_operand.hbm [shape: f32[2,1,128], index: 6, kind: input, shape index: {}]
  %s7 = inlined_call_operand.hbm [shape: f32[2,1,128], index: 7, kind: input, shape index: {}]
  %s8 = inlined_call_operand.hbm [shape: f32[2,1,128], index: 8, kind: input, shape index: {}]
  %s9 = inlined_call_operand.hbm [shape: bf16[2,128,256], index: 9, kind: input, shape index: {}]
  %s10 = inlined_call_operand.hbm [shape: f32[2,1,256], index: 10, kind: input, shape index: {}]
  %s11 = inlined_call_operand.hbm [shape: bf16[2,256,128], index: 11, kind: input, shape index: {}]
  %s12 = inlined_call_operand.hbm [shape: f32[2,1,128], index: 12, kind: input, shape index: {}]
  %s13 = inlined_call_operand.hbm [shape: f32[1,128], index: 13, kind: input, shape index: {}]
  %s14 = inlined_call_operand.hbm [shape: f32[1,128], index: 14, kind: input, shape index: {}]
  %s15 = inlined_call_operand.hbm [shape: f32[2,16,128], index: 15, kind: output, shape index: {}]
  %s16 = sld [smem:[#allocation0]]
  $region165: #{tpu_custom_call.1} parent=0
    _
  %s18 = ssub.s32 1, %s16
  %s19 = scalar_select 0, %s18, %s16
  $region1: #{tpu_custom_call.1} parent=0
    #allocation3 [shape = 'u8[16384]{0}', space=vmem, size = 0x4000, scoped, tag = 'input window, operand 0']
    #allocation4 [shape = 's32[2]{0}', space=sflag, size = 0x8, scoped, tag = 'scoped memory for tpu_custom_call.1']
    #allocation5 [shape = 's32[2]{0}', space=sflag, size = 0x8, scoped, tag = 'scoped memory for tpu_custom_call.1']
    #allocation6 [shape = 'u8[1024]{0}', space=vmem, size = 0x400, scoped, tag = 'input window, operand 1']
    #allocation7 [shape = 's32[2]{0}', space=sflag, size = 0x8, scoped, tag = 'scoped memory for tpu_custom_call.1']
    #allocation8 [shape = 'u8[1024]{0}', space=vmem, size = 0x400, scoped, tag = 'input window, operand 2']
    #allocation9 [shape = 'u8[196608]{0}', space=vmem, size = 0x30000, scoped, tag = 'input window, operand 3']
    #allocation10 [shape = 's32[2]{0}', space=sflag, size = 0x8, scoped, tag = 'scoped memory for tpu_custom_call.1']
    #allocation11 [shape = 'u8[3072]{0}', space=vmem, size = 0xc00, scoped, tag = 'input window, operand 4']
    #allocation12 [shape = 'u8[65536]{0}', space=vmem, size = 0x10000, scoped, tag = 'input window, operand 5']
    #allocation13 [shape = 's32[2]{0}', space=sflag, size = 0x8, scoped, tag = 'scoped memory for tpu_custom_call.1']
    #allocation14 [shape = 'u8[1024]{0}', space=vmem, size = 0x400, scoped, tag = 'input window, operand 6']
    #allocation15 [shape = 'u8[1024]{0}', space=vmem, size = 0x400, scoped, tag = 'input window, operand 7']
    #allocation16 [shape = 's32[2]{0}', space=sflag, size = 0x8, scoped, tag = 'scoped memory for tpu_custom_call.1']
    #allocation17 [shape = 'u8[1024]{0}', space=vmem, size = 0x400, scoped, tag = 'input window, operand 8']
    #allocation18 [shape = 'u8[131072]{0}', space=vmem, size = 0x20000, scoped, tag = 'input window, operand 9']
    #allocation19 [shape = 's32[2]{0}', space=sflag, size = 0x8, scoped, tag = 'scoped memory for tpu_custom_call.1']
    #allocation20 [shape = 'u8[2048]{0}', space=vmem, size = 0x800, scoped, tag = 'input window, operand 10']
    #allocation21 [shape = 'u8[131072]{0}', space=vmem, size = 0x20000, scoped, tag = 'input window, operand 11']
    #allocation22 [shape = 's32[2]{0}', space=sflag, size = 0x8, scoped, tag = 'scoped memory for tpu_custom_call.1']
    #allocation23 [shape = 'u8[1024]{0}', space=vmem, size = 0x400, scoped, tag = 'input window, operand 12']
    #allocation24 [shape = 'u8[512]{0}', space=vmem, size = 0x400, scoped, tag = 'input window, operand 13, single buffered']
    #allocation25 [shape = 's32[1]{0}', space=sflag, size = 0x4, scoped, tag = 'scoped memory for tpu_custom_call.1']
    #allocation26 [shape = 'u8[512]{0}', space=vmem, size = 0x400, scoped, tag = 'input window, operand 14, single buffered']
    #allocation27 [shape = 'u8[16384]{0}', space=vmem, size = 0x4000, scoped, tag = 'output window, operand 0']
    %20 = vsyncpa [#allocation4], 0
    %s21 = scalar_lea.sflag [#allocation4], 1
    %22 = vsyncpa %s21, 0
    %23 = vsyncpa [#allocation7], 0
    %s24 = scalar_lea.sflag [#allocation7], 1
    %25 = vsyncpa %s24, 0
    %26 = vsyncpa [#allocation10], 0
    %s27 = scalar_lea.sflag [#allocation10], 1
    %28 = vsyncpa %s27, 0
    %29 = vsyncpa [#allocation13], 0
    %s30 = scalar_lea.sflag [#allocation13], 1
    %31 = vsyncpa %s30, 0
    %32 = vsyncpa [#allocation16], 0
    %s33 = scalar_lea.sflag [#allocation16], 1
    %34 = vsyncpa %s33, 0
    %35 = vsyncpa [#allocation19], 0
    %s36 = scalar_lea.sflag [#allocation19], 1
    %37 = vsyncpa %s36, 0
    %38 = vsyncpa [#allocation22], 0
    %s39 = scalar_lea.sflag [#allocation22], 1
    %40 = vsyncpa %s39, 0
    %41 = vsyncpa [#allocation25], 0
    %42 = vsyncpa [#allocation5], 0
    %s43 = scalar_lea.sflag [#allocation5], 1
    %44 = vsyncpa %s43, 0
    loop: start=0, step=1, limit=6
    $region2: #{tpu_custom_call.1} parent=1 // loop_pre_header
      _
    $region3: #{tpu_custom_call.1} parent=1 // loop_header
      %s46 = sphi 0, %s50
      %p47 = scmp.ge.s32.totalorder %s46, 6
      %s53 = sphi 0, %s65
      %s54 = sphi 0, %s61
      %s55 = sphi 0, %s53
      %s56 = sphi 0, %s54
      %s57 = sphi 0, %s55
      %s58 = sphi 0, %s56
      %s68 = sphi 0, %s70
      %s71 = sphi 0, %s68
      %s72 = sphi 0, %s71
      %s88 = sphi 0, %s72
      %s94 = sphi 0, %s96
      %s97 = sphi 0, %s94
      %s98 = sphi 0, %s97
      %s114 = sphi 0, %s98
      %s120 = sphi 0, %s122
      %s123 = sphi 0, %s120
      %s124 = sphi 0, %s123
      %s140 = sphi 0, %s124
      %s146 = sphi 0, %s148
      %s149 = sphi 0, %s146
      %s150 = sphi 0, %s149
      %s166 = sphi 0, %s150
      %s172 = sphi 0, %s174
      %s175 = sphi 0, %s172
      %s176 = sphi 0, %s175
      %s192 = sphi 0, %s176
      %s198 = sphi 0, %s200
      %s201 = sphi 0, %s198
      %s202 = sphi 0, %s201
      %s218 = sphi 0, %s202
      %s224 = sphi 0, %s226
      %s227 = sphi 0, %s224
      %s228 = sphi 0, %s227
      %s244 = sphi 0, %s228
      %s250 = sphi 0, %s252
      %s253 = sphi 0, %s250
      %s254 = sphi 0, %s253
      %s270 = sphi 0, %s254
      %s276 = sphi 0, %s278
      %s279 = sphi 0, %s276
      %s280 = sphi 0, %s279
      %s296 = sphi 0, %s280
      %s302 = sphi 0, %s304
      %s305 = sphi 0, %s302
      %s306 = sphi 0, %s305
      %s322 = sphi 0, %s306
      %s328 = sphi 0, %s330
      %s331 = sphi 0, %s328
      %s332 = sphi 0, %s331
      %s348 = sphi 0, %s332
      %s354 = sphi 0, %s356
      %s357 = sphi 0, %s354
      %s358 = sphi 0, %s357
      %s374 = sphi 0, %s358
      %s380 = sphi 0, %s382
      %s383 = sphi 0, %s380
      %s384 = sphi 0, %s383
      %s400 = sphi 0, %s384
      %s404 = sphi 0, %s404
      %s406 = sphi 0, %s404
      %s407 = sphi 0, %s406
      %s421 = sphi 0, %s407
      %s425 = sphi 0, %s425
      %s427 = sphi 0, %s425
      %s428 = sphi 0, %s427
      %s442 = sphi 0, %s428
      %s448 = sphi 0, %s450
      %s451 = sphi 0, %s448
      %s452 = sphi 0, %s451
      %s468 = sphi 0, %s452
    $region4: #{tpu_custom_call.1} parent=1 // loop_header_branch
      %49 = sbr.rel (%p47) target = $region8
    $region5: #{tpu_custom_call.1} parent=1 // loop_body
      %s51 = ssub.s32 %s46, 1
      %s52 = ssub.s32 %s46, 2
      %s59 = sadd.s32 1, %s54
      %p60 = scmp.ge.s32.totalorder %s59, 2
      %s61 = scalar_select %p60, 0, %s59
      %s62 = sadd.s32 1, %s53
      %s63 = scalar_select %p60, %s62, %s53
      %p64 = scmp.ge.s32.totalorder %s63, 2
      %s65 = scalar_select %p64, 0, %s63
      %s66 = ssub.s32 %s53, %s65
      %p67 = scmp.eq.s32.totalorder %s66, 0
      %s69 = sadd.s32 %s68, 1
      %s70 = scalar_select %p67, %s68, %s69
      %p73 = pneg %p67
      %p74 = scmp.eq.s32.totalorder %s46, 3
      %p75 = por %p73, %p74
      %p76 = scmp.ne.s32.totalorder %s68, %s71
      %p77 = scmp.eq.s32.totalorder %s46, 0
      %p78 = por %p76, %p77
      %p79 = scmp.ne.s32.totalorder %s68, %s71
      %p80 = scmp.eq.s32.totalorder %s51, 3
      %p81 = por %p79, %p80
      %p82 = scmp.ne.s32.totalorder %s71, %s72
      %p83 = scmp.eq.s32.totalorder %s51, 0
      %p84 = por %p82, %p83
      %p85 = scmp.ne.s32.totalorder %s71, %s72
      %p86 = scmp.eq.s32.totalorder %s52, 3
      %p87 = por %p85, %p86
      %p89 = scmp.ne.s32.totalorder %s72, %s88
      %p90 = scmp.eq.s32.totalorder %s52, 0
      %p91 = por %p89, %p90
      %s92 = ssub.s32 %s54, %s61
      %p93 = scmp.eq.s32.totalorder %s92, 0
      %s95 = sadd.s32 %s94, 1
      %s96 = scalar_select %p93, %s94, %s95
      %p99 = pneg %p93
      %p100 = scmp.eq.s32.totalorder %s46, 3
      %p101 = por %p99, %p100
      %p102 = scmp.ne.s32.totalorder %s94, %s97
      %p103 = scmp.eq.s32.totalorder %s46, 0
      %p104 = por %p102, %p103
      %p105 = scmp.ne.s32.totalorder %s94, %s97
      %p106 = scmp.eq.s32.totalorder %s51, 3
      %p107 = por %p105, %p106
      %p108 = scmp.ne.s32.totalorder %s97, %s98
      %p109 = scmp.eq.s32.totalorder %s51, 0
      %p110 = por %p108, %p109
      %p111 = scmp.ne.s32.totalorder %s97, %s98
      %p112 = scmp.eq.s32.totalorder %s52, 3
      %p113 = por %p111, %p112
      %p115 = scmp.ne.s32.totalorder %s98, %s114
      %p116 = scmp.eq.s32.totalorder %s52, 0
      %p117 = por %p115, %p116
      %s118 = ssub.s32 %s54, %s61
      %p119 = scmp.eq.s32.totalorder %s118, 0
      %s121 = sadd.s32 %s120, 1
      %s122 = scalar_select %p119, %s120, %s121
      %p125 = pneg %p119
      %p126 = scmp.eq.s32.totalorder %s46, 3
      %p127 = por %p125, %p126
      %p128 = scmp.ne.s32.totalorder %s120, %s123
      %p129 = scmp.eq.s32.totalorder %s46, 0
      %p130 = por %p128, %p129
      %p131 = scmp.ne.s32.totalorder %s120, %s123
      %p132 = scmp.eq.s32.totalorder %s51, 3
      %p133 = por %p131, %p132
      %p134 = scmp.ne.s32.totalorder %s123, %s124
      %p135 = scmp.eq.s32.totalorder %s51, 0
      %p136 = por %p134, %p135
      %p137 = scmp.ne.s32.totalorder %s123, %s124
      %p138 = scmp.eq.s32.totalorder %s52, 3
      %p139 = por %p137, %p138
      %p141 = scmp.ne.s32.totalorder %s124, %s140
      %p142 = scmp.eq.s32.totalorder %s52, 0
      %p143 = por %p141, %p142
      %s144 = ssub.s32 %s54, %s61
      %p145 = scmp.eq.s32.totalorder %s144, 0
      %s147 = sadd.s32 %s146, 1
      %s148 = scalar_select %p145, %s146, %s147
      %p151 = pneg %p145
      %p152 = scmp.eq.s32.totalorder %s46, 3
      %p153 = por %p151, %p152
      %p154 = scmp.ne.s32.totalorder %s146, %s149
      %p155 = scmp.eq.s32.totalorder %s46, 0
      %p156 = por %p154, %p155
      %p157 = scmp.ne.s32.totalorder %s146, %s149
      %p158 = scmp.eq.s32.totalorder %s51, 3
      %p159 = por %p157, %p158
      %p160 = scmp.ne.s32.totalorder %s149, %s150
      %p161 = scmp.eq.s32.totalorder %s51, 0
      %p162 = por %p160, %p161
      %p163 = scmp.ne.s32.totalorder %s149, %s150
      %p164 = scmp.eq.s32.totalorder %s52, 3
      %p165 = por %p163, %p164
      %p167 = scmp.ne.s32.totalorder %s150, %s166
      %p168 = scmp.eq.s32.totalorder %s52, 0
      %p169 = por %p167, %p168
      %s170 = ssub.s32 %s54, %s61
      %p171 = scmp.eq.s32.totalorder %s170, 0
      %s173 = sadd.s32 %s172, 1
      %s174 = scalar_select %p171, %s172, %s173
      %p177 = pneg %p171
      %p178 = scmp.eq.s32.totalorder %s46, 3
      %p179 = por %p177, %p178
      %p180 = scmp.ne.s32.totalorder %s172, %s175
      %p181 = scmp.eq.s32.totalorder %s46, 0
      %p182 = por %p180, %p181
      %p183 = scmp.ne.s32.totalorder %s172, %s175
      %p184 = scmp.eq.s32.totalorder %s51, 3
      %p185 = por %p183, %p184
      %p186 = scmp.ne.s32.totalorder %s175, %s176
      %p187 = scmp.eq.s32.totalorder %s51, 0
      %p188 = por %p186, %p187
      %p189 = scmp.ne.s32.totalorder %s175, %s176
      %p190 = scmp.eq.s32.totalorder %s52, 3
      %p191 = por %p189, %p190
      %p193 = scmp.ne.s32.totalorder %s176, %s192
      %p194 = scmp.eq.s32.totalorder %s52, 0
      %p195 = por %p193, %p194
      %s196 = ssub.s32 %s54, %s61
      %p197 = scmp.eq.s32.totalorder %s196, 0
      %s199 = sadd.s32 %s198, 1
      %s200 = scalar_select %p197, %s198, %s199
      %p203 = pneg %p197
      %p204 = scmp.eq.s32.totalorder %s46, 3
      %p205 = por %p203, %p204
      %p206 = scmp.ne.s32.totalorder %s198, %s201
      %p207 = scmp.eq.s32.totalorder %s46, 0
      %p208 = por %p206, %p207
      %p209 = scmp.ne.s32.totalorder %s198, %s201
      %p210 = scmp.eq.s32.totalorder %s51, 3
      %p211 = por %p209, %p210
      %p212 = scmp.ne.s32.totalorder %s201, %s202
      %p213 = scmp.eq.s32.totalorder %s51, 0
      %p214 = por %p212, %p213
      %p215 = scmp.ne.s32.totalorder %s201, %s202
      %p216 = scmp.eq.s32.totalorder %s52, 3
      %p217 = por %p215, %p216
      %p219 = scmp.ne.s32.totalorder %s202, %s218
      %p220 = scmp.eq.s32.totalorder %s52, 0
      %p221 = por %p219, %p220
      %s222 = ssub.s32 %s54, %s61
      %p223 = scmp.eq.s32.totalorder %s222, 0
      %s225 = sadd.s32 %s224, 1
      %s226 = scalar_select %p223, %s224, %s225
      %p229 = pneg %p223
      %p230 = scmp.eq.s32.totalorder %s46, 3
      %p231 = por %p229, %p230
      %p232 = scmp.ne.s32.totalorder %s224, %s227
      %p233 = scmp.eq.s32.totalorder %s46, 0
      %p234 = por %p232, %p233
      %p235 = scmp.ne.s32.totalorder %s224, %s227
      %p236 = scmp.eq.s32.totalorder %s51, 3
      %p237 = por %p235, %p236
      %p238 = scmp.ne.s32.totalorder %s227, %s228
      %p239 = scmp.eq.s32.totalorder %s51, 0
      %p240 = por %p238, %p239
      %p241 = scmp.ne.s32.totalorder %s227, %s228
      %p242 = scmp.eq.s32.totalorder %s52, 3
      %p243 = por %p241, %p242
      %p245 = scmp.ne.s32.totalorder %s228, %s244
      %p246 = scmp.eq.s32.totalorder %s52, 0
      %p247 = por %p245, %p246
      %s248 = ssub.s32 %s54, %s61
      %p249 = scmp.eq.s32.totalorder %s248, 0
      %s251 = sadd.s32 %s250, 1
      %s252 = scalar_select %p249, %s250, %s251
      %p255 = pneg %p249
      %p256 = scmp.eq.s32.totalorder %s46, 3
      %p257 = por %p255, %p256
      %p258 = scmp.ne.s32.totalorder %s250, %s253
      %p259 = scmp.eq.s32.totalorder %s46, 0
      %p260 = por %p258, %p259
      %p261 = scmp.ne.s32.totalorder %s250, %s253
      %p262 = scmp.eq.s32.totalorder %s51, 3
      %p263 = por %p261, %p262
      %p264 = scmp.ne.s32.totalorder %s253, %s254
      %p265 = scmp.eq.s32.totalorder %s51, 0
      %p266 = por %p264, %p265
      %p267 = scmp.ne.s32.totalorder %s253, %s254
      %p268 = scmp.eq.s32.totalorder %s52, 3
      %p269 = por %p267, %p268
      %p271 = scmp.ne.s32.totalorder %s254, %s270
      %p272 = scmp.eq.s32.totalorder %s52, 0
      %p273 = por %p271, %p272
      %s274 = ssub.s32 %s54, %s61
      %p275 = scmp.eq.s32.totalorder %s274, 0
      %s277 = sadd.s32 %s276, 1
      %s278 = scalar_select %p275, %s276, %s277
      %p281 = pneg %p275
      %p282 = scmp.eq.s32.totalorder %s46, 3
      %p283 = por %p281, %p282
      %p284 = scmp.ne.s32.totalorder %s276, %s279
      %p285 = scmp.eq.s32.totalorder %s46, 0
      %p286 = por %p284, %p285
      %p287 = scmp.ne.s32.totalorder %s276, %s279
      %p288 = scmp.eq.s32.totalorder %s51, 3
      %p289 = por %p287, %p288
      %p290 = scmp.ne.s32.totalorder %s279, %s280
      %p291 = scmp.eq.s32.totalorder %s51, 0
      %p292 = por %p290, %p291
      %p293 = scmp.ne.s32.totalorder %s279, %s280
      %p294 = scmp.eq.s32.totalorder %s52, 3
      %p295 = por %p293, %p294
      %p297 = scmp.ne.s32.totalorder %s280, %s296
      %p298 = scmp.eq.s32.totalorder %s52, 0
      %p299 = por %p297, %p298
      %s300 = ssub.s32 %s54, %s61
      %p301 = scmp.eq.s32.totalorder %s300, 0
      %s303 = sadd.s32 %s302, 1
      %s304 = scalar_select %p301, %s302, %s303
      %p307 = pneg %p301
      %p308 = scmp.eq.s32.totalorder %s46, 3
      %p309 = por %p307, %p308
      %p310 = scmp.ne.s32.totalorder %s302, %s305
      %p311 = scmp.eq.s32.totalorder %s46, 0
      %p312 = por %p310, %p311
      %p313 = scmp.ne.s32.totalorder %s302, %s305
      %p314 = scmp.eq.s32.totalorder %s51, 3
      %p315 = por %p313, %p314
      %p316 = scmp.ne.s32.totalorder %s305, %s306
      %p317 = scmp.eq.s32.totalorder %s51, 0
      %p318 = por %p316, %p317
      %p319 = scmp.ne.s32.totalorder %s305, %s306
      %p320 = scmp.eq.s32.totalorder %s52, 3
      %p321 = por %p319, %p320
      %p323 = scmp.ne.s32.totalorder %s306, %s322
      %p324 = scmp.eq.s32.totalorder %s52, 0
      %p325 = por %p323, %p324
      %s326 = ssub.s32 %s54, %s61
      %p327 = scmp.eq.s32.totalorder %s326, 0
      %s329 = sadd.s32 %s328, 1
      %s330 = scalar_select %p327, %s328, %s329
      %p333 = pneg %p327
      %p334 = scmp.eq.s32.totalorder %s46, 3
      %p335 = por %p333, %p334
      %p336 = scmp.ne.s32.totalorder %s328, %s331
      %p337 = scmp.eq.s32.totalorder %s46, 0
      %p338 = por %p336, %p337
      %p339 = scmp.ne.s32.totalorder %s328, %s331
      %p340 = scmp.eq.s32.totalorder %s51, 3
      %p341 = por %p339, %p340
      %p342 = scmp.ne.s32.totalorder %s331, %s332
      %p343 = scmp.eq.s32.totalorder %s51, 0
      %p344 = por %p342, %p343
      %p345 = scmp.ne.s32.totalorder %s331, %s332
      %p346 = scmp.eq.s32.totalorder %s52, 3
      %p347 = por %p345, %p346
      %p349 = scmp.ne.s32.totalorder %s332, %s348
      %p350 = scmp.eq.s32.totalorder %s52, 0
      %p351 = por %p349, %p350
      %s352 = ssub.s32 %s54, %s61
      %p353 = scmp.eq.s32.totalorder %s352, 0
      %s355 = sadd.s32 %s354, 1
      %s356 = scalar_select %p353, %s354, %s355
      %p359 = pneg %p353
      %p360 = scmp.eq.s32.totalorder %s46, 3
      %p361 = por %p359, %p360
      %p362 = scmp.ne.s32.totalorder %s354, %s357
      %p363 = scmp.eq.s32.totalorder %s46, 0
      %p364 = por %p362, %p363
      %p365 = scmp.ne.s32.totalorder %s354, %s357
      %p366 = scmp.eq.s32.totalorder %s51, 3
      %p367 = por %p365, %p366
      %p368 = scmp.ne.s32.totalorder %s357, %s358
      %p369 = scmp.eq.s32.totalorder %s51, 0
      %p370 = por %p368, %p369
      %p371 = scmp.ne.s32.totalorder %s357, %s358
      %p372 = scmp.eq.s32.totalorder %s52, 3
      %p373 = por %p371, %p372
      %p375 = scmp.ne.s32.totalorder %s358, %s374
      %p376 = scmp.eq.s32.totalorder %s52, 0
      %p377 = por %p375, %p376
      %s378 = ssub.s32 %s54, %s61
      %p379 = scmp.eq.s32.totalorder %s378, 0
      %s381 = sadd.s32 %s380, 1
      %s382 = scalar_select %p379, %s380, %s381
      %p385 = pneg %p379
      %p386 = scmp.eq.s32.totalorder %s46, 3
      %p387 = por %p385, %p386
      %p388 = scmp.ne.s32.totalorder %s380, %s383
      %p389 = scmp.eq.s32.totalorder %s46, 0
      %p390 = por %p388, %p389
      %p391 = scmp.ne.s32.totalorder %s380, %s383
      %p392 = scmp.eq.s32.totalorder %s51, 3
      %p393 = por %p391, %p392
      %p394 = scmp.ne.s32.totalorder %s383, %s384
      %p395 = scmp.eq.s32.totalorder %s51, 0
      %p396 = por %p394, %p395
      %p397 = scmp.ne.s32.totalorder %s383, %s384
      %p398 = scmp.eq.s32.totalorder %s52, 3
      %p399 = por %p397, %p398
      %p401 = scmp.ne.s32.totalorder %s384, %s400
      %p402 = scmp.eq.s32.totalorder %s52, 0
      %p403 = por %p401, %p402
      %s405 = sadd.s32 %s404, 1
      %p408 = scmp.eq.s32.totalorder %s46, 3
      %p409 = scmp.ne.s32.totalorder %s404, %s406
      %p410 = scmp.eq.s32.totalorder %s46, 0
      %p411 = por %p409, %p410
      %p412 = scmp.ne.s32.totalorder %s404, %s406
      %p413 = scmp.eq.s32.totalorder %s51, 3
      %p414 = por %p412, %p413
      %p415 = scmp.ne.s32.totalorder %s406, %s407
      %p416 = scmp.eq.s32.totalorder %s51, 0
      %p417 = por %p415, %p416
      %p418 = scmp.ne.s32.totalorder %s406, %s407
      %p419 = scmp.eq.s32.totalorder %s52, 3
      %p420 = por %p418, %p419
      %p422 = scmp.ne.s32.totalorder %s407, %s421
      %p423 = scmp.eq.s32.totalorder %s52, 0
      %p424 = por %p422, %p423
      %s426 = sadd.s32 %s425, 1
      %p429 = scmp.eq.s32.totalorder %s46, 3
      %p430 = scmp.ne.s32.totalorder %s425, %s427
      %p431 = scmp.eq.s32.totalorder %s46, 0
      %p432 = por %p430, %p431
      %p433 = scmp.ne.s32.totalorder %s425, %s427
      %p434 = scmp.eq.s32.totalorder %s51, 3
      %p435 = por %p433, %p434
      %p436 = scmp.ne.s32.totalorder %s427, %s428
      %p437 = scmp.eq.s32.totalorder %s51, 0
      %p438 = por %p436, %p437
      %p439 = scmp.ne.s32.totalorder %s427, %s428
      %p440 = scmp.eq.s32.totalorder %s52, 3
      %p441 = por %p439, %p440
      %p443 = scmp.ne.s32.totalorder %s428, %s442
      %p444 = scmp.eq.s32.totalorder %s52, 0
      %p445 = por %p443, %p444
      %s446 = ssub.s32 %s53, %s65
      %p447 = scmp.eq.s32.totalorder %s446, 0
      %s449 = sadd.s32 %s448, 1
      %s450 = scalar_select %p447, %s448, %s449
      %p453 = pneg %p447
      %p454 = scmp.eq.s32.totalorder %s46, 3
      %p455 = por %p453, %p454
      %p456 = scmp.ne.s32.totalorder %s448, %s451
      %p457 = scmp.eq.s32.totalorder %s46, 0
      %p458 = por %p456, %p457
      %p459 = scmp.ne.s32.totalorder %s448, %s451
      %p460 = scmp.eq.s32.totalorder %s51, 3
      %p461 = por %p459, %p460
      %p462 = scmp.ne.s32.totalorder %s451, %s452
      %p463 = scmp.eq.s32.totalorder %s51, 0
      %p464 = por %p462, %p463
      %p465 = scmp.ne.s32.totalorder %s451, %s452
      %p466 = scmp.eq.s32.totalorder %s52, 3
      %p467 = por %p465, %p466
      %p469 = scmp.ne.s32.totalorder %s452, %s468
      %p470 = scmp.eq.s32.totalorder %s52, 0
      %p471 = por %p469, %p470
      %p472 = scmp.le.s32.totalorder 1, %s46
      %p473 = scmp.lt.s32.totalorder %s46, 5
      %p474 = pnand %p472, %p473
      %p475 = pneg %p474
      // Predicated region
      $region9: #{tpu_custom_call.1} parent=5 // pred_check
        _
      $region10: #{tpu_custom_call.1} parent=5 // pred_check_branch
        %477 = sbr.rel (%p474) target = $region12
      $region11: #{tpu_custom_call.1} parent=5 // pred_region
        %s478 = ssub.s32 %s46, 1
        // Predicated region
        $region13: #{tpu_custom_call.1} parent=11 // pred_check
          %p479 = pneg %p417
        $region14: #{tpu_custom_call.1} parent=11 // pred_check_branch
          %481 = sbr.rel (%p479) target = $region16
        $region15: #{tpu_custom_call.1} parent=11 // pred_region
          %s483 = ssub.s32 16, 16
          %484 = vsyncadd [#allocation25], %s483
          %s486 = sshll.u32 [#allocation24], 4
          %s487 = int_to_ptr.vmem [resolvable:$true] %s486
          %489 = dma.hbm_to_vmem [thread:$0]  %s13, 16, %s487, [#allocation25]
        $region16: #{tpu_custom_call.1} parent=11 // pred_fallthru
          _
        // Predicated region
        $region17: #{tpu_custom_call.1} parent=11 // pred_check
          %p490 = pneg %p438
        $region18: #{tpu_custom_call.1} parent=11 // pred_check_branch
          %492 = sbr.rel (%p490) target = $region20
        $region19: #{tpu_custom_call.1} parent=11 // pred_region
          %s494 = ssub.s32 16, 16
          %495 = vsyncadd [#allocation25], %s494
          %s497 = sshll.u32 [#allocation26], 4
          %s498 = int_to_ptr.vmem [resolvable:$true] %s497
          %500 = dma.hbm_to_vmem [thread:$0]  %s14, 16, %s498, [#allocation25]
        $region20: #{tpu_custom_call.1} parent=11 // pred_fallthru
          _
      $region12: #{tpu_custom_call.1} parent=5 // pred_fallthru
        _
      %p501 = scmp.lt.s32.totalorder %s46, 4
      // Predicated region
      $region21: #{tpu_custom_call.1} parent=5 // pred_check
        %p502 = pneg %p501
      $region22: #{tpu_custom_call.1} parent=5 // pred_check_branch
        %504 = sbr.rel (%p502) target = $region24
      $region23: #{tpu_custom_call.1} parent=5 // pred_region
        // Predicated region
        $region25: #{tpu_custom_call.1} parent=23 // pred_check
          %p505 = pneg %p78
        $region26: #{tpu_custom_call.1} parent=23 // pred_check_branch
          %507 = sbr.rel (%p505) target = $region28
        $region27: #{tpu_custom_call.1} parent=23 // pred_region
          %s508 = sand.u32 %s68, 1
          %s509 = scalar_lea.sflag [#allocation4], %s508
          %s510 = sand.u32 %s68, 1
          %s511 = smul.addr %s510, 16
          %s512 = scalar_lea.vmem [#allocation3], %s511
          %s514 = ssub.s32 256, 256
          %515 = vsyncadd %s509, %s514
          %s516 = smul.addr %s53, 2
          %s517 = smul.addr %s516, 128
          %s518 = scalar_lea.hbm %s0, %s517
          %s519 = sshll.u32 %s512, 4
          %s520 = int_to_ptr.vmem [resolvable:$true] %s519
          %525 = dma.hbm_to_vmem [thread:$0]  %s518, 256, %s520, %s509, 128, 128, 8
        $region28: #{tpu_custom_call.1} parent=23 // pred_fallthru
          _
        // Predicated region
        $region29: #{tpu_custom_call.1} parent=23 // pred_check
          %p526 = pneg %p104
        $region30: #{tpu_custom_call.1} parent=23 // pred_check_branch
          %528 = sbr.rel (%p526) target = $region32
        $region31: #{tpu_custom_call.1} parent=23 // pred_region
          %s529 = sand.u32 %s46, 1
          %s530 = scalar_lea.sflag [#allocation7], %s529
          %s531 = sand.u32 %s94, 1
          %s532 = scalar_lea.vmem [#allocation6], %s531
          %s534 = ssub.s32 16, 16
          %535 = vsyncadd %s530, %s534
          %s536 = smul.addr %s54, 16
          %s537 = scalar_lea.hbm %s1, %s536
          %s539 = sshll.u32 %s532, 4
          %s540 = int_to_ptr.vmem [resolvable:$true] %s539
          %542 = dma.hbm_to_vmem [thread:$0]  %s537, 16, %s540, %s530
        $region32: #{tpu_custom_call.1} parent=23 // pred_fallthru
          _
        // Predicated region
        $region33: #{tpu_custom_call.1} parent=23 // pred_check
          %p543 = pneg %p130
        $region34: #{tpu_custom_call.1} parent=23 // pred_check_branch
          %545 = sbr.rel (%p543) target = $region36
        $region35: #{tpu_custom_call.1} parent=23 // pred_region
          %s546 = sand.u32 %s46, 1
          %s547 = scalar_lea.sflag [#allocation7], %s546
          %s548 = sand.u32 %s120, 1
          %s549 = scalar_lea.vmem [#allocation8], %s548
          %s551 = ssub.s32 16, 16
          %552 = vsyncadd %s547, %s551
          %s553 = smul.addr %s54, 16
          %s554 = scalar_lea.hbm %s2, %s553
          %s556 = sshll.u32 %s549, 4
          %s557 = int_to_ptr.vmem [resolvable:$true] %s556
          %559 = dma.hbm_to_vmem [thread:$0]  %s554, 16, %s557, %s547
        $region36: #{tpu_custom_call.1} parent=23 // pred_fallthru
          _
        // Predicated region
        $region37: #{tpu_custom_call.1} parent=23 // pred_check
          %p560 = pneg %p156
        $region38: #{tpu_custom_call.1} parent=23 // pred_check_branch
          %562 = sbr.rel (%p560) target = $region40
        $region39: #{tpu_custom_call.1} parent=23 // pred_region
          %s563 = sand.u32 %s46, 1
          %s564 = scalar_lea.sflag [#allocation10], %s563
          %s565 = sand.u32 %s146, 1
          %s566 = smul.addr %s565, 192
          %s567 = scalar_lea.vmem [#allocation9], %s566
          %s569 = ssub.s32 3072, 3072
          %570 = vsyncadd %s564, %s569
          %s571 = smul.addr %s54, 48
          %s572 = smul.addr %s571, 64
          %s573 = scalar_lea.hbm %s3, %s572
          %s574 = sshll.u32 %s567, 4
          %s575 = int_to_ptr.vmem [resolvable:$true] %s574
          %580 = dma.hbm_to_vmem [thread:$0]  %s573, 3072, %s575, %s564, 192, 192, 12
        $region40: #{tpu_custom_call.1} parent=23 // pred_fallthru
          _
        // Predicated region
        $region41: #{tpu_custom_call.1} parent=23 // pred_check
          %p581 = pneg %p182
        $region42: #{tpu_custom_call.1} parent=23 // pred_check_branch
          %583 = sbr.rel (%p581) target = $region44
        $region43: #{tpu_custom_call.1} parent=23 // pred_region
          %s584 = sand.u32 %s46, 1
          %s585 = scalar_lea.sflag [#allocation10], %s584
          %s586 = sand.u32 %s172, 1
          %s587 = smul.addr %s586, 3
          %s588 = scalar_lea.vmem [#allocation11], %s587
          %s590 = ssub.s32 48, 48
          %591 = vsyncadd %s585, %s590
          %s592 = smul.addr %s54, 3
          %s593 = smul.addr %s592, 16
          %s594 = scalar_lea.hbm %s4, %s593
          %s596 = sshll.u32 %s588, 4
          %s597 = int_to_ptr.vmem [resolvable:$true] %s596
          %599 = dma.hbm_to_vmem [thread:$0]  %s594, 48, %s597, %s585
        $region44: #{tpu_custom_call.1} parent=23 // pred_fallthru
          _
        // Predicated region
        $region45: #{tpu_custom_call.1} parent=23 // pred_check
          %p600 = pneg %p208
        $region46: #{tpu_custom_call.1} parent=23 // pred_check_branch
          %602 = sbr.rel (%p600) target = $region48
        $region47: #{tpu_custom_call.1} parent=23 // pred_region
          %s603 = sand.u32 %s46, 1
          %s604 = scalar_lea.sflag [#allocation13], %s603
          %s605 = sand.u32 %s198, 1
          %s606 = smul.addr %s605, 64
          %s607 = scalar_lea.vmem [#allocation12], %s606
          %s609 = ssub.s32 1024, 1024
          %610 = vsyncadd %s604, %s609
          %s611 = smul.addr %s54, 16
          %s612 = smul.addr %s611, 64
          %s613 = scalar_lea.hbm %s5, %s612
          %s614 = sshll.u32 %s607, 4
          %s615 = int_to_ptr.vmem [resolvable:$true] %s614
          %620 = dma.hbm_to_vmem [thread:$0]  %s613, 1024, %s615, %s604, 64, 64, 4
        $region48: #{tpu_custom_call.1} parent=23 // pred_fallthru
          _
        // Predicated region
        $region49: #{tpu_custom_call.1} parent=23 // pred_check
          %p621 = pneg %p234
        $region50: #{tpu_custom_call.1} parent=23 // pred_check_branch
          %623 = sbr.rel (%p621) target = $region52
        $region51: #{tpu_custom_call.1} parent=23 // pred_region
          %s624 = sand.u32 %s46, 1
          %s625 = scalar_lea.sflag [#allocation13], %s624
          %s626 = sand.u32 %s224, 1
          %s627 = scalar_lea.vmem [#allocation14], %s626
          %s629 = ssub.s32 16, 16
          %630 = vsyncadd %s625, %s629
          %s631 = smul.addr %s54, 16
          %s632 = scalar_lea.hbm %s6, %s631
          %s634 = sshll.u32 %s627, 4
          %s635 = int_to_ptr.vmem [resolvable:$true] %s634
          %637 = dma.hbm_to_vmem [thread:$0]  %s632, 16, %s635, %s625
        $region52: #{tpu_custom_call.1} parent=23 // pred_fallthru
          _
        // Predicated region
        $region53: #{tpu_custom_call.1} parent=23 // pred_check
          %p638 = pneg %p260
        $region54: #{tpu_custom_call.1} parent=23 // pred_check_branch
          %640 = sbr.rel (%p638) target = $region56
        $region55: #{tpu_custom_call.1} parent=23 // pred_region
          %s641 = sand.u32 %s46, 1
          %s642 = scalar_lea.sflag [#allocation16], %s641
          %s643 = sand.u32 %s250, 1
          %s644 = scalar_lea.vmem [#allocation15], %s643
          %s646 = ssub.s32 16, 16
          %647 = vsyncadd %s642, %s646
          %s648 = smul.addr %s54, 16
          %s649 = scalar_lea.hbm %s7, %s648
          %s651 = sshll.u32 %s644, 4
          %s652 = int_to_ptr.vmem [resolvable:$true] %s651
          %654 = dma.hbm_to_vmem [thread:$0]  %s649, 16, %s652, %s642
        $region56: #{tpu_custom_call.1} parent=23 // pred_fallthru
          _
        // Predicated region
        $region57: #{tpu_custom_call.1} parent=23 // pred_check
          %p655 = pneg %p286
        $region58: #{tpu_custom_call.1} parent=23 // pred_check_branch
          %657 = sbr.rel (%p655) target = $region60
        $region59: #{tpu_custom_call.1} parent=23 // pred_region
          %s658 = sand.u32 %s46, 1
          %s659 = scalar_lea.sflag [#allocation16], %s658
          %s660 = sand.u32 %s276, 1
          %s661 = scalar_lea.vmem [#allocation17], %s660
          %s663 = ssub.s32 16, 16
          %664 = vsyncadd %s659, %s663
          %s665 = smul.addr %s54, 16
          %s666 = scalar_lea.hbm %s8, %s665
          %s668 = sshll.u32 %s661, 4
          %s669 = int_to_ptr.vmem [resolvable:$true] %s668
          %671 = dma.hbm_to_vmem [thread:$0]  %s666, 16, %s669, %s659
        $region60: #{tpu_custom_call.1} parent=23 // pred_fallthru
          _
        // Predicated region
        $region61: #{tpu_custom_call.1} parent=23 // pred_check
          %p672 = pneg %p312
        $region62: #{tpu_custom_call.1} parent=23 // pred_check_branch
          %674 = sbr.rel (%p672) target = $region64
        $region63: #{tpu_custom_call.1} parent=23 // pred_region
          %s675 = sand.u32 %s46, 1
          %s676 = scalar_lea.sflag [#allocation19], %s675
          %s677 = sand.u32 %s302, 1
          %s678 = smul.addr %s677, 128
          %s679 = scalar_lea.vmem [#allocation18], %s678
          %s681 = ssub.s32 2048, 2048
          %682 = vsyncadd %s676, %s681
          %s683 = smul.addr %s54, 32
          %s684 = smul.addr %s683, 64
          %s685 = scalar_lea.hbm %s9, %s684
          %s686 = sshll.u32 %s679, 4
          %s687 = int_to_ptr.vmem [resolvable:$true] %s686
          %692 = dma.hbm_to_vmem [thread:$0]  %s685, 2048, %s687, %s676, 128, 128, 8
        $region64: #{tpu_custom_call.1} parent=23 // pred_fallthru
          _
        // Predicated region
        $region65: #{tpu_custom_call.1} parent=23 // pred_check
          %p693 = pneg %p338
        $region66: #{tpu_custom_call.1} parent=23 // pred_check_branch
          %695 = sbr.rel (%p693) target = $region68
        $region67: #{tpu_custom_call.1} parent=23 // pred_region
          %s696 = sand.u32 %s46, 1
          %s697 = scalar_lea.sflag [#allocation19], %s696
          %s698 = sand.u32 %s328, 1
          %s699 = smul.addr %s698, 2
          %s700 = scalar_lea.vmem [#allocation20], %s699
          %s702 = ssub.s32 32, 32
          %703 = vsyncadd %s697, %s702
          %s704 = smul.addr %s54, 2
          %s705 = smul.addr %s704, 16
          %s706 = scalar_lea.hbm %s10, %s705
          %s708 = sshll.u32 %s700, 4
          %s709 = int_to_ptr.vmem [resolvable:$true] %s708
          %711 = dma.hbm_to_vmem [thread:$0]  %s706, 32, %s709, %s697
        $region68: #{tpu_custom_call.1} parent=23 // pred_fallthru
          _
        // Predicated region
        $region69: #{tpu_custom_call.1} parent=23 // pred_check
          %p712 = pneg %p364
        $region70: #{tpu_custom_call.1} parent=23 // pred_check_branch
          %714 = sbr.rel (%p712) target = $region72
        $region71: #{tpu_custom_call.1} parent=23 // pred_region
          %s715 = sand.u32 %s46, 1
          %s716 = scalar_lea.sflag [#allocation22], %s715
          %s717 = sand.u32 %s354, 1
          %s718 = smul.addr %s717, 128
          %s719 = scalar_lea.vmem [#allocation21], %s718
          %s721 = ssub.s32 2048, 2048
          %722 = vsyncadd %s716, %s721
          %s723 = smul.addr %s54, 32
          %s724 = smul.addr %s723, 64
          %s725 = scalar_lea.hbm %s11, %s724
          %s726 = sshll.u32 %s719, 4
          %s727 = int_to_ptr.vmem [resolvable:$true] %s726
          %732 = dma.hbm_to_vmem [thread:$0]  %s725, 2048, %s727, %s716, 64, 64, 4
        $region72: #{tpu_custom_call.1} parent=23 // pred_fallthru
          _
        // Predicated region
        $region73: #{tpu_custom_call.1} parent=23 // pred_check
          %p733 = pneg %p390
        $region74: #{tpu_custom_call.1} parent=23 // pred_check_branch
          %735 = sbr.rel (%p733) target = $region76
        $region75: #{tpu_custom_call.1} parent=23 // pred_region
          %s736 = sand.u32 %s46, 1
          %s737 = scalar_lea.sflag [#allocation22], %s736
          %s738 = sand.u32 %s380, 1
          %s739 = scalar_lea.vmem [#allocation23], %s738
          %s741 = ssub.s32 16, 16
          %742 = vsyncadd %s737, %s741
          %s743 = smul.addr %s54, 16
          %s744 = scalar_lea.hbm %s12, %s743
          %s746 = sshll.u32 %s739, 4
          %s747 = int_to_ptr.vmem [resolvable:$true] %s746
          %749 = dma.hbm_to_vmem [thread:$0]  %s744, 16, %s747, %s737
        $region76: #{tpu_custom_call.1} parent=23 // pred_fallthru
          _
      $region24: #{tpu_custom_call.1} parent=5 // pred_fallthru
        _
      %p750 = scmp.le.s32.totalorder 1, %s46
      %p751 = scmp.lt.s32.totalorder %s46, 5
      %p752 = pnand %p750, %p751
      %p753 = pneg %p752
      // Predicated region
      $region77: #{tpu_custom_call.1} parent=5 // pred_check
        _
      $region78: #{tpu_custom_call.1} parent=5 // pred_check_branch
        %755 = sbr.rel (%p752) target = $region80
      $region79: #{tpu_custom_call.1} parent=5 // pred_region
        %s756 = ssub.s32 %s46, 1
        %s757 = sand.u32 %s71, 1
        %s758 = scalar_lea.sflag [#allocation4], %s757
        %s759 = sand.u32 %s71, 1
        %s760 = smul.addr %s759, 16
        %s761 = scalar_lea.vmem [#allocation3], %s760
        // Predicated region
        $region81: #{tpu_custom_call.1} parent=79 // pred_check
          %p762 = pneg %p84
        $region82: #{tpu_custom_call.1} parent=79 // pred_check_branch
          %764 = sbr.rel (%p762) target = $region84
        $region83: #{tpu_custom_call.1} parent=79 // pred_region
          %765 = dma.done %s758, 256
        $region84: #{tpu_custom_call.1} parent=79 // pred_fallthru
          _
        %s766 = sand.u32 %s51, 1
        %s767 = scalar_lea.sflag [#allocation7], %s766
        %s768 = sand.u32 %s97, 1
        %s769 = scalar_lea.vmem [#allocation6], %s768
        // Predicated region
        $region85: #{tpu_custom_call.1} parent=79 // pred_check
          %p770 = pneg %p110
        $region86: #{tpu_custom_call.1} parent=79 // pred_check_branch
          %772 = sbr.rel (%p770) target = $region88
        $region87: #{tpu_custom_call.1} parent=79 // pred_region
          %773 = dma.done %s767, 16
        $region88: #{tpu_custom_call.1} parent=79 // pred_fallthru
          _
        %s774 = sand.u32 %s51, 1
        %s775 = scalar_lea.sflag [#allocation7], %s774
        %s776 = sand.u32 %s123, 1
        %s777 = scalar_lea.vmem [#allocation8], %s776
        // Predicated region
        $region89: #{tpu_custom_call.1} parent=79 // pred_check
          %p778 = pneg %p136
        $region90: #{tpu_custom_call.1} parent=79 // pred_check_branch
          %780 = sbr.rel (%p778) target = $region92
        $region91: #{tpu_custom_call.1} parent=79 // pred_region
          %781 = dma.done %s775, 16
        $region92: #{tpu_custom_call.1} parent=79 // pred_fallthru
          _
        %s782 = sand.u32 %s51, 1
        %s783 = scalar_lea.sflag [#allocation10], %s782
        %s784 = sand.u32 %s149, 1
        %s785 = smul.addr %s784, 192
        %s786 = scalar_lea.vmem [#allocation9], %s785
        // Predicated region
        $region93: #{tpu_custom_call.1} parent=79 // pred_check
          %p787 = pneg %p162
        $region94: #{tpu_custom_call.1} parent=79 // pred_check_branch
          %789 = sbr.rel (%p787) target = $region96
        $region95: #{tpu_custom_call.1} parent=79 // pred_region
          %790 = dma.done %s783, 3072
        $region96: #{tpu_custom_call.1} parent=79 // pred_fallthru
          _
        %s791 = sand.u32 %s51, 1
        %s792 = scalar_lea.sflag [#allocation10], %s791
        %s793 = sand.u32 %s175, 1
        %s794 = smul.addr %s793, 3
        %s795 = scalar_lea.vmem [#allocation11], %s794
        // Predicated region
        $region97: #{tpu_custom_call.1} parent=79 // pred_check
          %p796 = pneg %p188
        $region98: #{tpu_custom_call.1} parent=79 // pred_check_branch
          %798 = sbr.rel (%p796) target = $region100
        $region99: #{tpu_custom_call.1} parent=79 // pred_region
          %799 = dma.done %s792, 48
        $region100: #{tpu_custom_call.1} parent=79 // pred_fallthru
          _
        %s800 = sand.u32 %s51, 1
        %s801 = scalar_lea.sflag [#allocation13], %s800
        %s802 = sand.u32 %s201, 1
        %s803 = smul.addr %s802, 64
        %s804 = scalar_lea.vmem [#allocation12], %s803
        // Predicated region
        $region101: #{tpu_custom_call.1} parent=79 // pred_check
          %p805 = pneg %p214
        $region102: #{tpu_custom_call.1} parent=79 // pred_check_branch
          %807 = sbr.rel (%p805) target = $region104
        $region103: #{tpu_custom_call.1} parent=79 // pred_region
          %808 = dma.done %s801, 1024
        $region104: #{tpu_custom_call.1} parent=79 // pred_fallthru
          _
        %s809 = sand.u32 %s51, 1
        %s810 = scalar_lea.sflag [#allocation13], %s809
        %s811 = sand.u32 %s227, 1
        %s812 = scalar_lea.vmem [#allocation14], %s811
        // Predicated region
        $region105: #{tpu_custom_call.1} parent=79 // pred_check
          %p813 = pneg %p240
        $region106: #{tpu_custom_call.1} parent=79 // pred_check_branch
          %815 = sbr.rel (%p813) target = $region108
        $region107: #{tpu_custom_call.1} parent=79 // pred_region
          %816 = dma.done %s810, 16
        $region108: #{tpu_custom_call.1} parent=79 // pred_fallthru
          _
        %s817 = sand.u32 %s51, 1
        %s818 = scalar_lea.sflag [#allocation16], %s817
        %s819 = sand.u32 %s253, 1
        %s820 = scalar_lea.vmem [#allocation15], %s819
        // Predicated region
        $region109: #{tpu_custom_call.1} parent=79 // pred_check
          %p821 = pneg %p266
        $region110: #{tpu_custom_call.1} parent=79 // pred_check_branch
          %823 = sbr.rel (%p821) target = $region112
        $region111: #{tpu_custom_call.1} parent=79 // pred_region
          %824 = dma.done %s818, 16
        $region112: #{tpu_custom_call.1} parent=79 // pred_fallthru
          _
        %s825 = sand.u32 %s51, 1
        %s826 = scalar_lea.sflag [#allocation16], %s825
        %s827 = sand.u32 %s279, 1
        %s828 = scalar_lea.vmem [#allocation17], %s827
        // Predicated region
        $region113: #{tpu_custom_call.1} parent=79 // pred_check
          %p829 = pneg %p292
        $region114: #{tpu_custom_call.1} parent=79 // pred_check_branch
          %831 = sbr.rel (%p829) target = $region116
        $region115: #{tpu_custom_call.1} parent=79 // pred_region
          %832 = dma.done %s826, 16
        $region116: #{tpu_custom_call.1} parent=79 // pred_fallthru
          _
        %s833 = sand.u32 %s51, 1
        %s834 = scalar_lea.sflag [#allocation19], %s833
        %s835 = sand.u32 %s305, 1
        %s836 = smul.addr %s835, 128
        %s837 = scalar_lea.vmem [#allocation18], %s836
        // Predicated region
        $region117: #{tpu_custom_call.1} parent=79 // pred_check
          %p838 = pneg %p318
        $region118: #{tpu_custom_call.1} parent=79 // pred_check_branch
          %840 = sbr.rel (%p838) target = $region120
        $region119: #{tpu_custom_call.1} parent=79 // pred_region
          %841 = dma.done %s834, 2048
        $region120: #{tpu_custom_call.1} parent=79 // pred_fallthru
          _
        %s842 = sand.u32 %s51, 1
        %s843 = scalar_lea.sflag [#allocation19], %s842
        %s844 = sand.u32 %s331, 1
        %s845 = smul.addr %s844, 2
        %s846 = scalar_lea.vmem [#allocation20], %s845
        // Predicated region
        $region121: #{tpu_custom_call.1} parent=79 // pred_check
          %p847 = pneg %p344
        $region122: #{tpu_custom_call.1} parent=79 // pred_check_branch
          %849 = sbr.rel (%p847) target = $region124
        $region123: #{tpu_custom_call.1} parent=79 // pred_region
          %850 = dma.done %s843, 32
        $region124: #{tpu_custom_call.1} parent=79 // pred_fallthru
          _
        %s851 = sand.u32 %s51, 1
        %s852 = scalar_lea.sflag [#allocation22], %s851
        %s853 = sand.u32 %s357, 1
        %s854 = smul.addr %s853, 128
        %s855 = scalar_lea.vmem [#allocation21], %s854
        // Predicated region
        $region125: #{tpu_custom_call.1} parent=79 // pred_check
          %p856 = pneg %p370
        $region126: #{tpu_custom_call.1} parent=79 // pred_check_branch
          %858 = sbr.rel (%p856) target = $region128
        $region127: #{tpu_custom_call.1} parent=79 // pred_region
          %859 = dma.done %s852, 2048
        $region128: #{tpu_custom_call.1} parent=79 // pred_fallthru
          _
        %s860 = sand.u32 %s51, 1
        %s861 = scalar_lea.sflag [#allocation22], %s860
        %s862 = sand.u32 %s383, 1
        %s863 = scalar_lea.vmem [#allocation23], %s862
        // Predicated region
        $region129: #{tpu_custom_call.1} parent=79 // pred_check
          %p864 = pneg %p396
        $region130: #{tpu_custom_call.1} parent=79 // pred_check_branch
          %866 = sbr.rel (%p864) target = $region132
        $region131: #{tpu_custom_call.1} parent=79 // pred_region
          %867 = dma.done %s861, 16
        $region132: #{tpu_custom_call.1} parent=79 // pred_fallthru
          _
        // Predicated region
        $region133: #{tpu_custom_call.1} parent=79 // pred_check
          %p868 = pneg %p417
        $region134: #{tpu_custom_call.1} parent=79 // pred_check_branch
          %870 = sbr.rel (%p868) target = $region136
        $region135: #{tpu_custom_call.1} parent=79 // pred_region
          %871 = dma.done [#allocation25], 16
        $region136: #{tpu_custom_call.1} parent=79 // pred_fallthru
          _
        // Predicated region
        $region137: #{tpu_custom_call.1} parent=79 // pred_check
          %p872 = pneg %p438
        $region138: #{tpu_custom_call.1} parent=79 // pred_check_branch
          %874 = sbr.rel (%p872) target = $region140
        $region139: #{tpu_custom_call.1} parent=79 // pred_region
          %875 = dma.done [#allocation25], 16
        $region140: #{tpu_custom_call.1} parent=79 // pred_fallthru
          _
        %s876 = sand.u32 %s71, 1
        %s877 = scalar_lea.sflag [#allocation4], %s876
        %s878 = sand.u32 %s71, 1
        %s879 = smul.addr %s878, 16
        %s880 = scalar_lea.vmem [#allocation3], %s879
        %p881 = pneg %p84
        %p882 = pneg %p81
        %s883 = sand.u32 %s51, 1
        %s884 = scalar_lea.sflag [#allocation7], %s883
        %s885 = sand.u32 %s97, 1
        %s886 = scalar_lea.vmem [#allocation6], %s885
        %p887 = pneg %p110
        %p888 = pneg %p107
        %s889 = sand.u32 %s51, 1
        %s890 = scalar_lea.sflag [#allocation7], %s889
        %s891 = sand.u32 %s123, 1
        %s892 = scalar_lea.vmem [#allocation8], %s891
        %p893 = pneg %p136
        %p894 = pneg %p133
        %s895 = sand.u32 %s51, 1
        %s896 = scalar_lea.sflag [#allocation10], %s895
        %s897 = sand.u32 %s149, 1
        %s898 = smul.addr %s897, 192
        %s899 = scalar_lea.vmem [#allocation9], %s898
        %p900 = pneg %p162
        %p901 = pneg %p159
        %s902 = sand.u32 %s51, 1
        %s903 = scalar_lea.sflag [#allocation10], %s902
        %s904 = sand.u32 %s175, 1
        %s905 = smul.addr %s904, 3
        %s906 = scalar_lea.vmem [#allocation11], %s905
        %p907 = pneg %p188
        %p908 = pneg %p185
        %s909 = sand.u32 %s51, 1
        %s910 = scalar_lea.sflag [#allocation13], %s909
        %s911 = sand.u32 %s201, 1
        %s912 = smul.addr %s911, 64
        %s913 = scalar_lea.vmem [#allocation12], %s912
        %p914 = pneg %p214
        %p915 = pneg %p211
        %s916 = sand.u32 %s51, 1
        %s917 = scalar_lea.sflag [#allocation13], %s916
        %s918 = sand.u32 %s227, 1
        %s919 = scalar_lea.vmem [#allocation14], %s918
        %p920 = pneg %p240
        %p921 = pneg %p237
        %s922 = sand.u32 %s51, 1
        %s923 = scalar_lea.sflag [#allocation16], %s922
        %s924 = sand.u32 %s253, 1
        %s925 = scalar_lea.vmem [#allocation15], %s924
        %p926 = pneg %p266
        %p927 = pneg %p263
        %s928 = sand.u32 %s51, 1
        %s929 = scalar_lea.sflag [#allocation16], %s928
        %s930 = sand.u32 %s279, 1
        %s931 = scalar_lea.vmem [#allocation17], %s930
        %p932 = pneg %p292
        %p933 = pneg %p289
        %s934 = sand.u32 %s51, 1
        %s935 = scalar_lea.sflag [#allocation19], %s934
        %s936 = sand.u32 %s305, 1
        %s937 = smul.addr %s936, 128
        %s938 = scalar_lea.vmem [#allocation18], %s937
        %p939 = pneg %p318
        %p940 = pneg %p315
        %s941 = sand.u32 %s51, 1
        %s942 = scalar_lea.sflag [#allocation19], %s941
        %s943 = sand.u32 %s331, 1
        %s944 = smul.addr %s943, 2
        %s945 = scalar_lea.vmem [#allocation20], %s944
        %p946 = pneg %p344
        %p947 = pneg %p341
        %s948 = sand.u32 %s51, 1
        %s949 = scalar_lea.sflag [#allocation22], %s948
        %s950 = sand.u32 %s357, 1
        %s951 = smul.addr %s950, 128
        %s952 = scalar_lea.vmem [#allocation21], %s951
        %p953 = pneg %p370
        %p954 = pneg %p367
        %s955 = sand.u32 %s51, 1
        %s956 = scalar_lea.sflag [#allocation22], %s955
        %s957 = sand.u32 %s383, 1
        %s958 = scalar_lea.vmem [#allocation23], %s957
        %p959 = pneg %p396
        %p960 = pneg %p393
        %p961 = pneg %p417
        %p962 = pneg %p414
        %p963 = pneg %p438
        %p964 = pneg %p435
        %p965 = pneg %p464
        %p966 = pneg %p461
        %s967 = sand.u32 %s451, 1
        %s968 = scalar_lea.sflag [#allocation5], %s967
        %s969 = sand.u32 %s451, 1
        %s970 = smul.addr %s969, 16
        %s971 = scalar_lea.vmem [#allocation27], %s970
        %p973 = scmp.eq.s32.totalorder %s56, 0
        // Predicated region
        $region141: #{tpu_custom_call.1} parent=79 // pred_check
          %p974 = pneg %p973
        $region142: #{tpu_custom_call.1} parent=79 // pred_check_branch
          %976 = sbr.rel (%p974) target = $region144
        $region143: #{tpu_custom_call.1} parent=79 // pred_region
          %v977 = vld [vmem:[%s761] sm:$0xff]
          %v978 = vld [vmem:[%s761 + $0x8] sm:$0xff]
          %979 = vst [vmem:[%s971] sm:$0xff] %v977
          %980 = vst [vmem:[%s971 + $0x8] sm:$0xff] %v978
        $region144: #{tpu_custom_call.1} parent=79 // pred_fallthru
          _
        %v981 = vld [vmem:[%s971] sm:$0xff]
        %v982 = vld [vmem:[%s971 + $0x8] sm:$0xff]
        %v983 = vld [vmem:[%s769] sm:$0x1]
        %v984 = vld [vmem:[%s777] sm:$0x1]
        %985 = vadd.xlane.f32.xlu0 %v981
        %v986 = vpop.xlane.xlu0 %985
        %987 = vadd.xlane.f32.xlu0 %v982
        %v988 = vpop.xlane.xlu0 %987
        %v989 = vrcp.pop 128.0
        %v990 = vmul.f32 %v986, %v989
        %v991 = vmul.f32 %v988, %v989
        %v992 = vsub.f32 %v981, %v990
        %v993 = vsub.f32 %v982, %v991
        %v994 = vmul.f32 %v992, %v992
        %v995 = vmul.f32 %v993, %v993
        %996 = vadd.xlane.f32.xlu0 %v994
        %v997 = vpop.xlane.xlu0 %996
        %998 = vadd.xlane.f32.xlu0 %v995
        %v999 = vpop.xlane.xlu0 %998
        %v1000 = vmul.f32 %v997, %v989
        %v1001 = vmul.f32 %v999, %v989
        %v1002 = vadd.f32 %v1000, 1e-05
        %v1003 = vadd.f32 %v1001, 1e-05
        %v1004 = vrsqrt.pop %v1002
        %v1005 = vrsqrt.pop %v1003
        %v1006 = vmul.f32 %v992, %v1004
        %v1007 = vmul.f32 %v993, %v1005
        %v1009 = vlaneseq
        %v1010 = vshrl.u32 %v1009, 7
        %v1011 = vsub.s32 0, %v1010
        %v1012 = vrot.slane %v983, %v1011
        %v1014 = vmul.f32 %v1006, %v1012
        %v1015 = vmul.f32 %v1007, %v1012
        %v1017 = vlaneseq
        %v1018 = vshrl.u32 %v1017, 7
        %v1019 = vsub.s32 0, %v1018
        %v1020 = vrot.slane %v984, %v1019
        %v1022 = vadd.f32 %v1014, %v1020
        %v1023 = vadd.f32 %v1015, %v1020
        %v1024 = vpack.c.bf16 %v1023, %v1022
        %v1025 = vld [vmem:[%s786] sm:$0xff]
        %v1026 = vld [vmem:[%s786 + $0x8] sm:$0xf]
        %v1027 = vld [vmem:[%s786 + $0xc] sm:$0xff]
        %v1028 = vld [vmem:[%s786 + $0x14] sm:$0xf]
        %v1029 = vld [vmem:[%s786 + $0x18] sm:$0xff]
        %v1030 = vld [vmem:[%s786 + $0x20] sm:$0xf]
        %v1031 = vld [vmem:[%s786 + $0x24] sm:$0xff]
        %v1032 = vld [vmem:[%s786 + $0x2c] sm:$0xf]
        %v1033 = vld [vmem:[%s786 + $0x30] sm:$0xff]
        %v1034 = vld [vmem:[%s786 + $0x38] sm:$0xf]
        %v1035 = vld [vmem:[%s786 + $0x3c] sm:$0xff]
        %v1036 = vld [vmem:[%s786 + $0x44] sm:$0xf]
        %v1037 = vld [vmem:[%s786 + $0x48] sm:$0xff]
        %v1038 = vld [vmem:[%s786 + $0x50] sm:$0xf]
        %v1039 = vld [vmem:[%s786 + $0x54] sm:$0xff]
        %v1040 = vld [vmem:[%s786 + $0x5c] sm:$0xf]
        %v1041 = vld [vmem:[%s786 + $0x60] sm:$0xff]
        %v1042 = vld [vmem:[%s786 + $0x68] sm:$0xf]
        %v1043 = vld [vmem:[%s786 + $0x6c] sm:$0xff]
        %v1044 = vld [vmem:[%s786 + $0x74] sm:$0xf]
        %v1045 = vld [vmem:[%s786 + $0x78] sm:$0xff]
        %v1046 = vld [vmem:[%s786 + $0x80] sm:$0xf]
        %v1047 = vld [vmem:[%s786 + $0x84] sm:$0xff]
        %v1048 = vld [vmem:[%s786 + $0x8c] sm:$0xf]
        %v1049 = vld [vmem:[%s786 + $0x90] sm:$0xff]
        %v1050 = vld [vmem:[%s786 + $0x98] sm:$0xf]
        %v1051 = vld [vmem:[%s786 + $0x9c] sm:$0xff]
        %v1052 = vld [vmem:[%s786 + $0xa4] sm:$0xf]
        %v1053 = vld [vmem:[%s786 + $0xa8] sm:$0xff]
        %v1054 = vld [vmem:[%s786 + $0xb0] sm:$0xf]
        %v1055 = vld [vmem:[%s786 + $0xb4] sm:$0xff]
        %v1056 = vld [vmem:[%s786 + $0xbc] sm:$0xf]
        %v1057 = vld [vmem:[%s795] sm:$0x7]
        %v1059 = vlaneseq
        %v1060 = vshrl.u32 %v1059, 7
        %v1061 = vsub.s32 0, %v1060
        %v1062 = vrot.slane %v1057, %v1061
        %v1063 = vlaneseq
        %v1064 = vshrl.u32 %v1063, 7
        %v1065 = vsub.s32 1, %v1064
        %v1066 = vrot.slane %v1057, %v1065
        %v1067 = vlaneseq
        %v1068 = vshrl.u32 %v1067, 7
        %v1069 = vsub.s32 2, %v1068
        %v1070 = vrot.slane %v1057, %v1069
        %v1106 = vunpack.c.l.b16 %v1025
        %v1107 = vunpack.c.h.b16 %v1025
        %v1108 = vunpack.c.l.b16 %v1026
        %v1109 = vunpack.c.l.b16 %v1027
        %v1110 = vunpack.c.h.b16 %v1027
        %v1111 = vunpack.c.l.b16 %v1028
        %v1112 = vunpack.c.l.b16 %v1029
        %v1113 = vunpack.c.h.b16 %v1029
        %v1114 = vunpack.c.l.b16 %v1030
        %v1115 = vunpack.c.l.b16 %v1031
        %v1116 = vunpack.c.h.b16 %v1031
        %v1117 = vunpack.c.l.b16 %v1032
        %v1118 = vunpack.c.l.b16 %v1033
        %v1119 = vunpack.c.h.b16 %v1033
        %v1120 = vunpack.c.l.b16 %v1034
        %v1121 = vunpack.c.l.b16 %v1035
        %v1122 = vunpack.c.h.b16 %v1035
        %v1123 = vunpack.c.l.b16 %v1036
        %v1124 = vunpack.c.l.b16 %v1037
        %v1125 = vunpack.c.h.b16 %v1037
        %v1126 = vunpack.c.l.b16 %v1038
        %v1127 = vunpack.c.l.b16 %v1039
        %v1128 = vunpack.c.h.b16 %v1039
        %v1129 = vunpack.c.l.b16 %v1040
        %v1130 = vunpack.c.l.b16 %v1041
        %v1131 = vunpack.c.h.b16 %v1041
        %v1132 = vunpack.c.l.b16 %v1042
        %v1133 = vunpack.c.l.b16 %v1043
        %v1134 = vunpack.c.h.b16 %v1043
        %v1135 = vunpack.c.l.b16 %v1044
        %v1136 = vunpack.c.l.b16 %v1045
        %v1137 = vunpack.c.h.b16 %v1045
        %v1138 = vunpack.c.l.b16 %v1046
        %v1139 = vunpack.c.l.b16 %v1047
        %v1140 = vunpack.c.h.b16 %v1047
        %v1141 = vunpack.c.l.b16 %v1048
        %v1142 = vunpack.c.l.b16 %v1049
        %v1143 = vunpack.c.h.b16 %v1049
        %v1144 = vunpack.c.l.b16 %v1050
        %v1145 = vunpack.c.l.b16 %v1051
        %v1146 = vunpack.c.h.b16 %v1051
        %v1147 = vunpack.c.l.b16 %v1052
        %v1148 = vunpack.c.l.b16 %v1053
        %v1149 = vunpack.c.h.b16 %v1053
        %v1150 = vunpack.c.l.b16 %v1054
        %v1151 = vunpack.c.l.b16 %v1055
        %v1152 = vunpack.c.h.b16 %v1055
        %v1153 = vunpack.c.l.b16 %v1056
        %v1154 = vpack.c.b16 %v1109, %v1106
        %v1155 = vpack.c.b16 %v1110, %v1107
        %v1156 = vpack.c.b16 %v1111, %v1108
        %v1157 = vpack.c.b16 %v1115, %v1112
        %v1158 = vpack.c.b16 %v1116, %v1113
        %v1159 = vpack.c.b16 %v1117, %v1114
        %v1160 = vpack.c.b16 %v1121, %v1118
        %v1161 = vpack.c.b16 %v1122, %v1119
        %v1162 = vpack.c.b16 %v1123, %v1120
        %v1163 = vpack.c.b16 %v1127, %v1124
        %v1164 = vpack.c.b16 %v1128, %v1125
        %v1165 = vpack.c.b16 %v1129, %v1126
        %v1166 = vpack.c.b16 %v1133, %v1130
        %v1167 = vpack.c.b16 %v1134, %v1131
        %v1168 = vpack.c.b16 %v1135, %v1132
        %v1169 = vpack.c.b16 %v1139, %v1136
        %v1170 = vpack.c.b16 %v1140, %v1137
        %v1171 = vpack.c.b16 %v1141, %v1138
        %v1172 = vpack.c.b16 %v1145, %v1142
        %v1173 = vpack.c.b16 %v1146, %v1143
        %v1174 = vpack.c.b16 %v1147, %v1144
        %v1175 = vpack.c.b16 %v1151, %v1148
        %v1176 = vpack.c.b16 %v1152, %v1149
        %v1177 = vpack.c.b16 %v1153, %v1150
        %1202 = vmatprep.subr.bf16.mxu0 %v1155
        %1203 = vmatpush1.bf16.msra.mxu0 %v1154
        %1204 = vmatprep.subr.bf16.mxu0 %v1158
        %1205 = vmatpush1.bf16.msra.mxu0 %v1157
        %1206 = vmatprep.subr.bf16.mxu0 %v1161
        %1207 = vmatpush1.bf16.msra.mxu0 %v1160
        %1208 = vmatprep.subr.bf16.mxu0 %v1164
        %1209 = vmatpush1.bf16.msra.mxu0 %v1163
        %1210 = vmatprep.subr.bf16.mxu0 %v1167
        %1211 = vmatpush1.bf16.msra.mxu0 %v1166
        %1212 = vmatprep.subr.bf16.mxu0 %v1170
        %1213 = vmatpush1.bf16.msra.mxu0 %v1169
        %1214 = vmatprep.subr.bf16.mxu0 %v1173
        %1215 = vmatpush1.bf16.msra.mxu0 %v1172
        %1216 = vmatprep.subr.bf16.mxu0 %v1176
        %1217 = vmatpush1.bf16.msra.mxu0 %v1175
        %1218 = vmatprep.subr.bf16.mxu0 0
        %1219 = vmatpush1.bf16.msra.mxu0 0
        %1220 = vmatprep.subr.bf16.mxu0 0
        %1221 = vmatpush1.bf16.msra.mxu0 0
        %1222 = vmatprep.subr.bf16.mxu0 0
        %1223 = vmatpush1.bf16.msra.mxu0 0
        %1224 = vmatprep.subr.bf16.mxu0 0
        %1225 = vmatpush1.bf16.msra.mxu0 0
        %1226 = vmatprep.subr.bf16.mxu0 0
        %1227 = vmatpush1.bf16.msra.mxu0 0
        %1228 = vmatprep.subr.bf16.mxu0 0
        %1229 = vmatpush1.bf16.msra.mxu0 0
        %1230 = vmatprep.subr.bf16.mxu0 0
        %1231 = vmatpush1.bf16.msra.mxu0 0
        %1232 = vmatprep.subr.bf16.mxu0 0
        %1233 = vmatpush1.bf16.msra.mxu0 0
        %1234 = vmatprep.mubr.bf16.mxu0 0
        %1235 = vmatmul.mubr.bf16.gmra.mrb[0].mxu0 %v1024
        %v1236 = vpop.f32.mrb[0].mxu0
        %v1237 = vadd.f32 %v1062, %v1236
        %v1238 = vpop.f32.mrb[0].mxu0
        %v1239 = vadd.f32 %v1066, %v1238
        %v1240 = vpop.f32.mrb[0].mxu0
        %v1241 = vadd.f32 %v1062, %v1240
        %v1242 = vpop.f32.mrb[0].mxu0
        %v1243 = vadd.f32 %v1066, %v1242
        %1244 = vdwg.mxu0
        %1245 = vmatprep.subr.bf16.mxu0 0
        %1246 = vmatpush1.bf16.msra.mxu0 %v1156
        %1247 = vmatprep.subr.bf16.mxu0 0
        %1248 = vmatpush1.bf16.msra.mxu0 %v1159
        %1249 = vmatprep.subr.bf16.mxu0 0
        %1250 = vmatpush1.bf16.msra.mxu0 %v1162
        %1251 = vmatprep.subr.bf16.mxu0 0
        %1252 = vmatpush1.bf16.msra.mxu0 %v1165
        %1253 = vmatprep.subr.bf16.mxu0 0
        %1254 = vmatpush1.bf16.msra.mxu0 %v1168
        %1255 = vmatprep.subr.bf16.mxu0 0
        %1256 = vmatpush1.bf16.msra.mxu0 %v1171
        %1257 = vmatprep.subr.bf16.mxu0 0
        %1258 = vmatpush1.bf16.msra.mxu0 %v1174
        %1259 = vmatprep.subr.bf16.mxu0 0
        %1260 = vmatpush1.bf16.msra.mxu0 %v1177
        %1261 = vmatprep.subr.bf16.mxu0 0
        %1262 = vmatpush1.bf16.msra.mxu0 0
        %1263 = vmatprep.subr.bf16.mxu0 0
        %1264 = vmatpush1.bf16.msra.mxu0 0
        %1265 = vmatprep.subr.bf16.mxu0 0
        %1266 = vmatpush1.bf16.msra.mxu0 0
        %1267 = vmatprep.subr.bf16.mxu0 0
        %1268 = vmatpush1.bf16.msra.mxu0 0
        %1269 = vmatprep.subr.bf16.mxu0 0
        %1270 = vmatpush1.bf16.msra.mxu0 0
        %1271 = vmatprep.subr.bf16.mxu0 0
        %1272 = vmatpush1.bf16.msra.mxu0 0
        %1273 = vmatprep.subr.bf16.mxu0 0
        %1274 = vmatpush1.bf16.msra.mxu0 0
        %1275 = vmatprep.subr.bf16.mxu0 0
        %1276 = vmatpush1.bf16.msra.mxu0 0
        %1277 = vmatprep.mubr.bf16.mxu0 0
        %1278 = vmatmul.mubr.bf16.gmra.mrb[0].mxu0 %v1024
        %v1279 = vpop.f32.mrb[0].mxu0
        %v1280 = vadd.f32 %v1070, %v1279
        %v1281 = vpop.f32.mrb[0].mxu0
        %v1282 = vpop.f32.mrb[0].mxu0
        %v1283 = vadd.f32 %v1070, %v1282
        %v1284 = vpop.f32.mrb[0].mxu0
        %1285 = vdwg.mxu0
        %v1286 = vpack.c.bf16 %v1241, %v1237
        %v1287 = vpack.c.bf16 %v1243, %v1239
        %v1288 = vpack.c.bf16 %v1283, %v1280
        %vm1289 = vcmask 261120
        %v1291 = vsel %vm1289, %v1286, 0
        %v1294 = vsel %vm1289, %v1287, 0
        %1296 = vmatprep.subr.bf16.mxu0 0
        %1297 = vmatpush1.bf16.xpose.msra.mxu0 %v1294
        %1298 = vmatprep.subr.bf16.mxu0 0
        %1299 = vmatpush1.bf16.xpose.msra.mxu0 0
        %1300 = vmatprep.subr.bf16.mxu0 0
        %1301 = vmatpush1.bf16.xpose.msra.mxu0 0
        %1302 = vmatprep.subr.bf16.mxu0 0
        %1303 = vmatpush1.bf16.xpose.msra.mxu0 0
        %1304 = vmatprep.subr.bf16.mxu0 0
        %1305 = vmatpush1.bf16.xpose.msra.mxu0 0
        %1306 = vmatprep.subr.bf16.mxu0 0
        %1307 = vmatpush1.bf16.xpose.msra.mxu0 0
        %1308 = vmatprep.subr.bf16.mxu0 0
        %1309 = vmatpush1.bf16.xpose.msra.mxu0 0
        %1310 = vmatprep.subr.bf16.mxu0 0
        %1311 = vmatpush1.bf16.xpose.msra.mxu0 0
        %1312 = vmatprep.subr.bf16.mxu0 0
        %1313 = vmatpush1.bf16.xpose.msra.mxu0 0
        %1314 = vmatprep.subr.bf16.mxu0 0
        %1315 = vmatpush1.bf16.xpose.msra.mxu0 0
        %1316 = vmatprep.subr.bf16.mxu0 0
        %1317 = vmatpush1.bf16.xpose.msra.mxu0 0
        %1318 = vmatprep.subr.bf16.mxu0 0
        %1319 = vmatpush1.bf16.xpose.msra.mxu0 0
        %1320 = vmatprep.subr.bf16.mxu0 0
        %1321 = vmatpush1.bf16.xpose.msra.mxu0 0
        %1322 = vmatprep.subr.bf16.mxu0 0
        %1323 = vmatpush1.bf16.xpose.msra.mxu0 0
        %1324 = vmatprep.subr.bf16.mxu0 0
        %1325 = vmatpush1.bf16.xpose.msra.mxu0 0
        %1326 = vmatprep.subr.bf16.mxu0 0
        %1327 = vmatpush1.bf16.xpose.msra.mxu0 0
        %1328 = vmatprep.mubr.bf16.mxu0 0
        %1329 = vmatmul.mubr.bf16.gmra.mrb[0].mxu0 %v1291
        %v1330 = vpop.f32.mrb[0].mxu0
        %v1331 = vadd.f32 0.0, %v1330
        %v1332 = vpop.f32.mrb[0].mxu0
        %v1333 = vpop.f32.mrb[0].mxu0
        %v1334 = vadd.f32 0.0, %v1333
        %v1335 = vpop.f32.mrb[0].mxu0
        %1336 = vdwg.mxu0
        %v1337 = vmul.f32 %v1331, 0.17677669
        %v1338 = vmul.f32 %v1334, 0.17677669
        %vm1339 = vcmask 130048
        %v1340 = vsel %vm1339, %v1337, -inf
        %1341 = vmax.xlane.f32.xlu0 %v1340
        %v1342 = vpop.xlane.xlu0 %1341
        %v1343 = vsel %vm1339, %v1338, -inf
        %1344 = vmax.xlane.f32.xlu0 %v1343
        %v1345 = vpop.xlane.xlu0 %1344
        %v1346 = vsub.f32 %v1337, %v1342
        %v1347 = vsub.f32 %v1338, %v1345
        %v1348 = vmul.f32 %v1346, 1.442695
        %v1349 = vpow.pop %v1348
        %v1350 = vmul.f32 %v1347, 1.442695
        %v1351 = vpow.pop %v1350
        %v1352 = vsel %vm1339, %v1349, 0.0
        %1353 = vadd.xlane.f32.xlu0 %v1352
        %v1354 = vpop.xlane.xlu0 %1353
        %v1355 = vsel %vm1339, %v1351, 0.0
        %1356 = vadd.xlane.f32.xlu0 %v1355
        %v1357 = vpop.xlane.xlu0 %1356
        %v1358 = vrcp.pop %v1354
        %v1359 = vrcp.pop %v1357
        %v1360 = vmul.f32 %v1349, %v1358
        %v1361 = vmul.f32 %v1351, %v1359
        %v1362 = vpack.c.bf16 %v1361, %v1360
        %v1364 = vsel %vm1339, %v1362, 0
        %1366 = vmatprep.subr.bf16.mxu0 0
        %1367 = vmatpush1.bf16.msra.mxu0 %v1288
        %1368 = vmatprep.subr.bf16.mxu0 0
        %1369 = vmatpush1.bf16.msra.mxu0 0
        %1370 = vmatprep.subr.bf16.mxu0 0
        %1371 = vmatpush1.bf16.msra.mxu0 0
        %1372 = vmatprep.subr.bf16.mxu0 0
        %1373 = vmatpush1.bf16.msra.mxu0 0
        %1374 = vmatprep.subr.bf16.mxu0 0
        %1375 = vmatpush1.bf16.msra.mxu0 0
        %1376 = vmatprep.subr.bf16.mxu0 0
        %1377 = vmatpush1.bf16.msra.mxu0 0
        %1378 = vmatprep.subr.bf16.mxu0 0
        %1379 = vmatpush1.bf16.msra.mxu0 0
        %1380 = vmatprep.subr.bf16.mxu0 0
        %1381 = vmatpush1.bf16.msra.mxu0 0
        %1382 = vmatprep.subr.bf16.mxu0 0
        %1383 = vmatpush1.bf16.msra.mxu0 0
        %1384 = vmatprep.subr.bf16.mxu0 0
        %1385 = vmatpush1.bf16.msra.mxu0 0
        %1386 = vmatprep.subr.bf16.mxu0 0
        %1387 = vmatpush1.bf16.msra.mxu0 0
        %1388 = vmatprep.subr.bf16.mxu0 0
        %1389 = vmatpush1.bf16.msra.mxu0 0
        %1390 = vmatprep.subr.bf16.mxu0 0
        %1391 = vmatpush1.bf16.msra.mxu0 0
        %1392 = vmatprep.subr.bf16.mxu0 0
        %1393 = vmatpush1.bf16.msra.mxu0 0
        %1394 = vmatprep.subr.bf16.mxu0 0
        %1395 = vmatpush1.bf16.msra.mxu0 0
        %1396 = vmatprep.subr.bf16.mxu0 0
        %1397 = vmatpush1.bf16.msra.mxu0 0
        %1398 = vmatprep.mubr.bf16.mxu0 0
        %1399 = vmatmul.mubr.bf16.gmra.mrb[0].mxu0 %v1364
        %v1400 = vpop.f32.mrb[0].mxu0
        %v1401 = vadd.f32 0.0, %v1400
        %v1402 = vpop.f32.mrb[0].mxu0
        %v1403 = vpop.f32.mrb[0].mxu0
        %v1404 = vadd.f32 0.0, %v1403
        %v1405 = vpop.f32.mrb[0].mxu0
        %1406 = vdwg.mxu0
        %1407 = vst.msk [vmem:[#allocation2] sm:$0xff] %vm1289, %v1401
        %1408 = vst.msk [vmem:[#allocation2 + $0x8] sm:$0xff] %vm1289, %v1404
        %1410 = vrot.lane.b32.xlu0 %v1286, 96
        %v1411 = vpop.permute.xlu0 %1410
        %1413 = vrot.lane.b32.xlu0 %v1287, 96
        %v1414 = vpop.permute.xlu0 %1413
        %v1416 = vsel %vm1289, %v1411, 0
        %v1419 = vsel %vm1289, %v1414, 0
        %1421 = vmatprep.subr.bf16.mxu0 0
        %1422 = vmatpush1.bf16.xpose.msra.mxu0 %v1419
        %1423 = vmatprep.subr.bf16.mxu0 0
        %1424 = vmatpush1.bf16.xpose.msra.mxu0 0
        %1425 = vmatprep.subr.bf16.mxu0 0
        %1426 = vmatpush1.bf16.xpose.msra.mxu0 0
        %1427 = vmatprep.subr.bf16.mxu0 0
        %1428 = vmatpush1.bf16.xpose.msra.mxu0 0
        %1429 = vmatprep.subr.bf16.mxu0 0
        %1430 = vmatpush1.bf16.xpose.msra.mxu0 0
        %1431 = vmatprep.subr.bf16.mxu0 0
        %1432 = vmatpush1.bf16.xpose.msra.mxu0 0
        %1433 = vmatprep.subr.bf16.mxu0 0
        %1434 = vmatpush1.bf16.xpose.msra.mxu0 0
        %1435 = vmatprep.subr.bf16.mxu0 0
        %1436 = vmatpush1.bf16.xpose.msra.mxu0 0
        %1437 = vmatprep.subr.bf16.mxu0 0
        %1438 = vmatpush1.bf16.xpose.msra.mxu0 0
        %1439 = vmatprep.subr.bf16.mxu0 0
        %1440 = vmatpush1.bf16.xpose.msra.mxu0 0
        %1441 = vmatprep.subr.bf16.mxu0 0
        %1442 = vmatpush1.bf16.xpose.msra.mxu0 0
        %1443 = vmatprep.subr.bf16.mxu0 0
        %1444 = vmatpush1.bf16.xpose.msra.mxu0 0
        %1445 = vmatprep.subr.bf16.mxu0 0
        %1446 = vmatpush1.bf16.xpose.msra.mxu0 0
        %1447 = vmatprep.subr.bf16.mxu0 0
        %1448 = vmatpush1.bf16.xpose.msra.mxu0 0
        %1449 = vmatprep.subr.bf16.mxu0 0
        %1450 = vmatpush1.bf16.xpose.msra.mxu0 0
        %1451 = vmatprep.subr.bf16.mxu0 0
        %1452 = vmatpush1.bf16.xpose.msra.mxu0 0
        %1453 = vmatprep.mubr.bf16.mxu0 0
        %1454 = vmatmul.mubr.bf16.gmra.mrb[0].mxu0 %v1416
        %v1455 = vpop.f32.mrb[0].mxu0
        %v1456 = vadd.f32 0.0, %v1455
        %v1457 = vpop.f32.mrb[0].mxu0
        %v1458 = vpop.f32.mrb[0].mxu0
        %v1459 = vadd.f32 0.0, %v1458
        %v1460 = vpop.f32.mrb[0].mxu0
        %1461 = vdwg.mxu0
        %v1462 = vmul.f32 %v1456, 0.17677669
        %v1463 = vmul.f32 %v1459, 0.17677669
        %v1464 = vsel %vm1339, %v1462, -inf
        %1465 = vmax.xlane.f32.xlu0 %v1464
        %v1466 = vpop.xlane.xlu0 %1465
        %v1467 = vsel %vm1339, %v1463, -inf
        %1468 = vmax.xlane.f32.xlu0 %v1467
        %v1469 = vpop.xlane.xlu0 %1468
        %v1470 = vsub.f32 %v1462, %v1466
        %v1471 = vsub.f32 %v1463, %v1469
        %v1472 = vmul.f32 %v1470, 1.442695
        %v1473 = vpow.pop %v1472
        %v1474 = vmul.f32 %v1471, 1.442695
        %v1475 = vpow.pop %v1474
        %v1476 = vsel %vm1339, %v1473, 0.0
        %1477 = vadd.xlane.f32.xlu0 %v1476
        %v1478 = vpop.xlane.xlu0 %1477
        %v1479 = vsel %vm1339, %v1475, 0.0
        %1480 = vadd.xlane.f32.xlu0 %v1479
        %v1481 = vpop.xlane.xlu0 %1480
        %v1482 = vrcp.pop %v1478
        %v1483 = vrcp.pop %v1481
        %v1484 = vmul.f32 %v1473, %v1482
        %v1485 = vmul.f32 %v1475, %v1483
        %v1486 = vpack.c.bf16 %v1485, %v1484
        %1488 = vrot.lane.b32.xlu0 %v1288, 96
        %v1489 = vpop.permute.xlu0 %1488
        %v1492 = vsel %vm1339, %v1486, 0
        %1494 = vmatprep.subr.bf16.mxu0 0
        %1495 = vmatpush1.bf16.msra.mxu0 %v1489
        %1496 = vmatprep.subr.bf16.mxu0 0
        %1497 = vmatpush1.bf16.msra.mxu0 0
        %1498 = vmatprep.subr.bf16.mxu0 0
        %1499 = vmatpush1.bf16.msra.mxu0 0
        %1500 = vmatprep.subr.bf16.mxu0 0
        %1501 = vmatpush1.bf16.msra.mxu0 0
        %1502 = vmatprep.subr.bf16.mxu0 0
        %1503 = vmatpush1.bf16.msra.mxu0 0
        %1504 = vmatprep.subr.bf16.mxu0 0
        %1505 = vmatpush1.bf16.msra.mxu0 0
        %1506 = vmatprep.subr.bf16.mxu0 0
        %1507 = vmatpush1.bf16.msra.mxu0 0
        %1508 = vmatprep.subr.bf16.mxu0 0
        %1509 = vmatpush1.bf16.msra.mxu0 0
        %1510 = vmatprep.subr.bf16.mxu0 0
        %1511 = vmatpush1.bf16.msra.mxu0 0
        %1512 = vmatprep.subr.bf16.mxu0 0
        %1513 = vmatpush1.bf16.msra.mxu0 0
        %1514 = vmatprep.subr.bf16.mxu0 0
        %1515 = vmatpush1.bf16.msra.mxu0 0
        %1516 = vmatprep.subr.bf16.mxu0 0
        %1517 = vmatpush1.bf16.msra.mxu0 0
        %1518 = vmatprep.subr.bf16.mxu0 0
        %1519 = vmatpush1.bf16.msra.mxu0 0
        %1520 = vmatprep.subr.bf16.mxu0 0
        %1521 = vmatpush1.bf16.msra.mxu0 0
        %1522 = vmatprep.subr.bf16.mxu0 0
        %1523 = vmatpush1.bf16.msra.mxu0 0
        %1524 = vmatprep.subr.bf16.mxu0 0
        %1525 = vmatpush1.bf16.msra.mxu0 0
        %1526 = vmatprep.mubr.bf16.mxu0 0
        %1527 = vmatmul.mubr.bf16.gmra.mrb[0].mxu0 %v1492
        %v1528 = vpop.f32.mrb[0].mxu0
        %v1529 = vadd.f32 0.0, %v1528
        %v1530 = vpop.f32.mrb[0].mxu0
        %v1531 = vpop.f32.mrb[0].mxu0
        %v1532 = vadd.f32 0.0, %v1531
        %v1533 = vpop.f32.mrb[0].mxu0
        %1534 = vdwg.mxu0
        %1537 = vrot.lane.b32.xlu0 %v1529, 32
        %v1538 = vpop.permute.xlu0 %1537
        %1539 = vrot.lane.b32.xlu0 %v1532, 32
        %v1540 = vpop.permute.xlu0 %1539
        %vm1543 = vcmask 523520
        %1544 = vst.msk [vmem:[#allocation2] sm:$0xff] %vm1543, %v1538
        %1545 = vst.msk [vmem:[#allocation2 + $0x8] sm:$0xff] %vm1543, %v1540
        %1546 = vrot.lane.b32.xlu0 %v1286, 64
        %v1547 = vpop.permute.xlu0 %1546
        %1548 = vrot.lane.b32.xlu0 %v1287, 64
        %v1549 = vpop.permute.xlu0 %1548
        %v1551 = vsel %vm1289, %v1547, 0
        %v1554 = vsel %vm1289, %v1549, 0
        %1556 = vmatprep.subr.bf16.mxu0 0
        %1557 = vmatpush1.bf16.xpose.msra.mxu0 %v1554
        %1558 = vmatprep.subr.bf16.mxu0 0
        %1559 = vmatpush1.bf16.xpose.msra.mxu0 0
        %1560 = vmatprep.subr.bf16.mxu0 0
        %1561 = vmatpush1.bf16.xpose.msra.mxu0 0
        %1562 = vmatprep.subr.bf16.mxu0 0
        %1563 = vmatpush1.bf16.xpose.msra.mxu0 0
        %1564 = vmatprep.subr.bf16.mxu0 0
        %1565 = vmatpush1.bf16.xpose.msra.mxu0 0
        %1566 = vmatprep.subr.bf16.mxu0 0
        %1567 = vmatpush1.bf16.xpose.msra.mxu0 0
        %1568 = vmatprep.subr.bf16.mxu0 0
        %1569 = vmatpush1.bf16.xpose.msra.mxu0 0
        %1570 = vmatprep.subr.bf16.mxu0 0
        %1571 = vmatpush1.bf16.xpose.msra.mxu0 0
        %1572 = vmatprep.subr.bf16.mxu0 0
        %1573 = vmatpush1.bf16.xpose.msra.mxu0 0
        %1574 = vmatprep.subr.bf16.mxu0 0
        %1575 = vmatpush1.bf16.xpose.msra.mxu0 0
        %1576 = vmatprep.subr.bf16.mxu0 0
        %1577 = vmatpush1.bf16.xpose.msra.mxu0 0
        %1578 = vmatprep.subr.bf16.mxu0 0
        %1579 = vmatpush1.bf16.xpose.msra.mxu0 0
        %1580 = vmatprep.subr.bf16.mxu0 0
        %1581 = vmatpush1.bf16.xpose.msra.mxu0 0
        %1582 = vmatprep.subr.bf16.mxu0 0
        %1583 = vmatpush1.bf16.xpose.msra.mxu0 0
        %1584 = vmatprep.subr.bf16.mxu0 0
        %1585 = vmatpush1.bf16.xpose.msra.mxu0 0
        %1586 = vmatprep.subr.bf16.mxu0 0
        %1587 = vmatpush1.bf16.xpose.msra.mxu0 0
        %1588 = vmatprep.mubr.bf16.mxu0 0
        %1589 = vmatmul.mubr.bf16.gmra.mrb[0].mxu0 %v1551
        %v1590 = vpop.f32.mrb[0].mxu0
        %v1591 = vadd.f32 0.0, %v1590
        %v1592 = vpop.f32.mrb[0].mxu0
        %v1593 = vpop.f32.mrb[0].mxu0
        %v1594 = vadd.f32 0.0, %v1593
        %v1595 = vpop.f32.mrb[0].mxu0
        %1596 = vdwg.mxu0
        %v1597 = vmul.f32 %v1591, 0.17677669
        %v1598 = vmul.f32 %v1594, 0.17677669
        %v1599 = vsel %vm1339, %v1597, -inf
        %1600 = vmax.xlane.f32.xlu0 %v1599
        %v1601 = vpop.xlane.xlu0 %1600
        %v1602 = vsel %vm1339, %v1598, -inf
        %1603 = vmax.xlane.f32.xlu0 %v1602
        %v1604 = vpop.xlane.xlu0 %1603
        %v1605 = vsub.f32 %v1597, %v1601
        %v1606 = vsub.f32 %v1598, %v1604
        %v1607 = vmul.f32 %v1605, 1.442695
        %v1608 = vpow.pop %v1607
        %v1609 = vmul.f32 %v1606, 1.442695
        %v1610 = vpow.pop %v1609
        %v1611 = vsel %vm1339, %v1608, 0.0
        %1612 = vadd.xlane.f32.xlu0 %v1611
        %v1613 = vpop.xlane.xlu0 %1612
        %v1614 = vsel %vm1339, %v1610, 0.0
        %1615 = vadd.xlane.f32.xlu0 %v1614
        %v1616 = vpop.xlane.xlu0 %1615
        %v1617 = vrcp.pop %v1613
        %v1618 = vrcp.pop %v1616
        %v1619 = vmul.f32 %v1608, %v1617
        %v1620 = vmul.f32 %v1610, %v1618
        %v1621 = vpack.c.bf16 %v1620, %v1619
        %1622 = vrot.lane.b32.xlu0 %v1288, 64
        %v1623 = vpop.permute.xlu0 %1622
        %v1626 = vsel %vm1339, %v1621, 0
        %1628 = vmatprep.subr.bf16.mxu0 0
        %1629 = vmatpush1.bf16.msra.mxu0 %v1623
        %1630 = vmatprep.subr.bf16.mxu0 0
        %1631 = vmatpush1.bf16.msra.mxu0 0
        %1632 = vmatprep.subr.bf16.mxu0 0
        %1633 = vmatpush1.bf16.msra.mxu0 0
        %1634 = vmatprep.subr.bf16.mxu0 0
        %1635 = vmatpush1.bf16.msra.mxu0 0
        %1636 = vmatprep.subr.bf16.mxu0 0
        %1637 = vmatpush1.bf16.msra.mxu0 0
        %1638 = vmatprep.subr.bf16.mxu0 0
        %1639 = vmatpush1.bf16.msra.mxu0 0
        %1640 = vmatprep.subr.bf16.mxu0 0
        %1641 = vmatpush1.bf16.msra.mxu0 0
        %1642 = vmatprep.subr.bf16.mxu0 0
        %1643 = vmatpush1.bf16.msra.mxu0 0
        %1644 = vmatprep.subr.bf16.mxu0 0
        %1645 = vmatpush1.bf16.msra.mxu0 0
        %1646 = vmatprep.subr.bf16.mxu0 0
        %1647 = vmatpush1.bf16.msra.mxu0 0
        %1648 = vmatprep.subr.bf16.mxu0 0
        %1649 = vmatpush1.bf16.msra.mxu0 0
        %1650 = vmatprep.subr.bf16.mxu0 0
        %1651 = vmatpush1.bf16.msra.mxu0 0
        %1652 = vmatprep.subr.bf16.mxu0 0
        %1653 = vmatpush1.bf16.msra.mxu0 0
        %1654 = vmatprep.subr.bf16.mxu0 0
        %1655 = vmatpush1.bf16.msra.mxu0 0
        %1656 = vmatprep.subr.bf16.mxu0 0
        %1657 = vmatpush1.bf16.msra.mxu0 0
        %1658 = vmatprep.subr.bf16.mxu0 0
        %1659 = vmatpush1.bf16.msra.mxu0 0
        %1660 = vmatprep.mubr.bf16.mxu0 0
        %1661 = vmatmul.mubr.bf16.gmra.mrb[0].mxu0 %v1626
        %v1662 = vpop.f32.mrb[0].mxu0
        %v1663 = vadd.f32 0.0, %v1662
        %v1664 = vpop.f32.mrb[0].mxu0
        %v1665 = vpop.f32.mrb[0].mxu0
        %v1666 = vadd.f32 0.0, %v1665
        %v1667 = vpop.f32.mrb[0].mxu0
        %1668 = vdwg.mxu0
        %1671 = vrot.lane.b32.xlu0 %v1663, 64
        %v1672 = vpop.permute.xlu0 %1671
        %1673 = vrot.lane.b32.xlu0 %v1666, 64
        %v1674 = vpop.permute.xlu0 %1673
        %vm1677 = vcmask 785920
        %1678 = vst.msk [vmem:[#allocation2] sm:$0xff] %vm1677, %v1672
        %1679 = vst.msk [vmem:[#allocation2 + $0x8] sm:$0xff] %vm1677, %v1674
        %1680 = vrot.lane.b32.xlu0 %v1286, 32
        %v1681 = vpop.permute.xlu0 %1680
        %1682 = vrot.lane.b32.xlu0 %v1287, 32
        %v1683 = vpop.permute.xlu0 %1682
        %v1685 = vsel %vm1289, %v1681, 0
        %v1688 = vsel %vm1289, %v1683, 0
        %1690 = vmatprep.subr.bf16.mxu0 0
        %1691 = vmatpush1.bf16.xpose.msra.mxu0 %v1688
        %1692 = vmatprep.subr.bf16.mxu0 0
        %1693 = vmatpush1.bf16.xpose.msra.mxu0 0
        %1694 = vmatprep.subr.bf16.mxu0 0
        %1695 = vmatpush1.bf16.xpose.msra.mxu0 0
        %1696 = vmatprep.subr.bf16.mxu0 0
        %1697 = vmatpush1.bf16.xpose.msra.mxu0 0
        %1698 = vmatprep.subr.bf16.mxu0 0
        %1699 = vmatpush1.bf16.xpose.msra.mxu0 0
        %1700 = vmatprep.subr.bf16.mxu0 0
        %1701 = vmatpush1.bf16.xpose.msra.mxu0 0
        %1702 = vmatprep.subr.bf16.mxu0 0
        %1703 = vmatpush1.bf16.xpose.msra.mxu0 0
        %1704 = vmatprep.subr.bf16.mxu0 0
        %1705 = vmatpush1.bf16.xpose.msra.mxu0 0
        %1706 = vmatprep.subr.bf16.mxu0 0
        %1707 = vmatpush1.bf16.xpose.msra.mxu0 0
        %1708 = vmatprep.subr.bf16.mxu0 0
        %1709 = vmatpush1.bf16.xpose.msra.mxu0 0
        %1710 = vmatprep.subr.bf16.mxu0 0
        %1711 = vmatpush1.bf16.xpose.msra.mxu0 0
        %1712 = vmatprep.subr.bf16.mxu0 0
        %1713 = vmatpush1.bf16.xpose.msra.mxu0 0
        %1714 = vmatprep.subr.bf16.mxu0 0
        %1715 = vmatpush1.bf16.xpose.msra.mxu0 0
        %1716 = vmatprep.subr.bf16.mxu0 0
        %1717 = vmatpush1.bf16.xpose.msra.mxu0 0
        %1718 = vmatprep.subr.bf16.mxu0 0
        %1719 = vmatpush1.bf16.xpose.msra.mxu0 0
        %1720 = vmatprep.subr.bf16.mxu0 0
        %1721 = vmatpush1.bf16.xpose.msra.mxu0 0
        %1722 = vmatprep.mubr.bf16.mxu0 0
        %1723 = vmatmul.mubr.bf16.gmra.mrb[0].mxu0 %v1685
        %v1724 = vpop.f32.mrb[0].mxu0
        %v1725 = vadd.f32 0.0, %v1724
        %v1726 = vpop.f32.mrb[0].mxu0
        %v1727 = vpop.f32.mrb[0].mxu0
        %v1728 = vadd.f32 0.0, %v1727
        %v1729 = vpop.f32.mrb[0].mxu0
        %1730 = vdwg.mxu0
        %v1731 = vmul.f32 %v1725, 0.17677669
        %v1732 = vmul.f32 %v1728, 0.17677669
        %v1733 = vsel %vm1339, %v1731, -inf
        %1734 = vmax.xlane.f32.xlu0 %v1733
        %v1735 = vpop.xlane.xlu0 %1734
        %v1736 = vsel %vm1339, %v1732, -inf
        %1737 = vmax.xlane.f32.xlu0 %v1736
        %v1738 = vpop.xlane.xlu0 %1737
        %v1739 = vsub.f32 %v1731, %v1735
        %v1740 = vsub.f32 %v1732, %v1738
        %v1741 = vmul.f32 %v1739, 1.442695
        %v1742 = vpow.pop %v1741
        %v1743 = vmul.f32 %v1740, 1.442695
        %v1744 = vpow.pop %v1743
        %v1745 = vsel %vm1339, %v1742, 0.0
        %1746 = vadd.xlane.f32.xlu0 %v1745
        %v1747 = vpop.xlane.xlu0 %1746
        %v1748 = vsel %vm1339, %v1744, 0.0
        %1749 = vadd.xlane.f32.xlu0 %v1748
        %v1750 = vpop.xlane.xlu0 %1749
        %v1751 = vrcp.pop %v1747
        %v1752 = vrcp.pop %v1750
        %v1753 = vmul.f32 %v1742, %v1751
        %v1754 = vmul.f32 %v1744, %v1752
        %v1755 = vpack.c.bf16 %v1754, %v1753
        %1756 = vrot.lane.b32.xlu0 %v1288, 32
        %v1757 = vpop.permute.xlu0 %1756
        %v1760 = vsel %vm1339, %v1755, 0
        %1762 = vmatprep.subr.bf16.mxu0 0
        %1763 = vmatpush1.bf16.msra.mxu0 %v1757
        %1764 = vmatprep.subr.bf16.mxu0 0
        %1765 = vmatpush1.bf16.msra.mxu0 0
        %1766 = vmatprep.subr.bf16.mxu0 0
        %1767 = vmatpush1.bf16.msra.mxu0 0
        %1768 = vmatprep.subr.bf16.mxu0 0
        %1769 = vmatpush1.bf16.msra.mxu0 0
        %1770 = vmatprep.subr.bf16.mxu0 0
        %1771 = vmatpush1.bf16.msra.mxu0 0
        %1772 = vmatprep.subr.bf16.mxu0 0
        %1773 = vmatpush1.bf16.msra.mxu0 0
        %1774 = vmatprep.subr.bf16.mxu0 0
        %1775 = vmatpush1.bf16.msra.mxu0 0
        %1776 = vmatprep.subr.bf16.mxu0 0
        %1777 = vmatpush1.bf16.msra.mxu0 0
        %1778 = vmatprep.subr.bf16.mxu0 0
        %1779 = vmatpush1.bf16.msra.mxu0 0
        %1780 = vmatprep.subr.bf16.mxu0 0
        %1781 = vmatpush1.bf16.msra.mxu0 0
        %1782 = vmatprep.subr.bf16.mxu0 0
        %1783 = vmatpush1.bf16.msra.mxu0 0
        %1784 = vmatprep.subr.bf16.mxu0 0
        %1785 = vmatpush1.bf16.msra.mxu0 0
        %1786 = vmatprep.subr.bf16.mxu0 0
        %1787 = vmatpush1.bf16.msra.mxu0 0
        %1788 = vmatprep.subr.bf16.mxu0 0
        %1789 = vmatpush1.bf16.msra.mxu0 0
        %1790 = vmatprep.subr.bf16.mxu0 0
        %1791 = vmatpush1.bf16.msra.mxu0 0
        %1792 = vmatprep.subr.bf16.mxu0 0
        %1793 = vmatpush1.bf16.msra.mxu0 0
        %1794 = vmatprep.mubr.bf16.mxu0 0
        %1795 = vmatmul.mubr.bf16.gmra.mrb[0].mxu0 %v1760
        %v1796 = vpop.f32.mrb[0].mxu0
        %v1797 = vadd.f32 0.0, %v1796
        %v1798 = vpop.f32.mrb[0].mxu0
        %v1799 = vpop.f32.mrb[0].mxu0
        %v1800 = vadd.f32 0.0, %v1799
        %v1801 = vpop.f32.mrb[0].mxu0
        %1802 = vdwg.mxu0
        %1805 = vrot.lane.b32.xlu0 %v1797, 96
        %v1806 = vpop.permute.xlu0 %1805
        %1807 = vrot.lane.b32.xlu0 %v1800, 96
        %v1808 = vpop.permute.xlu0 %1807
        %vm1811 = vcmask 1048320
        %1812 = vst.msk [vmem:[#allocation2] sm:$0xff] %vm1811, %v1806
        %1813 = vst.msk [vmem:[#allocation2 + $0x8] sm:$0xff] %vm1811, %v1808
        %v1814 = vld [vmem:[#allocation2] sm:$0xff]
        %v1815 = vld [vmem:[#allocation2 + $0x8] sm:$0xff]
        %v1816 = vpack.c.bf16 %v1815, %v1814
        %v1817 = vld [vmem:[%s804] sm:$0xf]
        %v1818 = vld [vmem:[%s804 + $0x4] sm:$0xf]
        %v1819 = vld [vmem:[%s804 + $0x8] sm:$0xf]
        %v1820 = vld [vmem:[%s804 + $0xc] sm:$0xf]
        %v1821 = vld [vmem:[%s804 + $0x10] sm:$0xf]
        %v1822 = vld [vmem:[%s804 + $0x14] sm:$0xf]
        %v1823 = vld [vmem:[%s804 + $0x18] sm:$0xf]
        %v1824 = vld [vmem:[%s804 + $0x1c] sm:$0xf]
        %v1825 = vld [vmem:[%s804 + $0x20] sm:$0xf]
        %v1826 = vld [vmem:[%s804 + $0x24] sm:$0xf]
        %v1827 = vld [vmem:[%s804 + $0x28] sm:$0xf]
        %v1828 = vld [vmem:[%s804 + $0x2c] sm:$0xf]
        %v1829 = vld [vmem:[%s804 + $0x30] sm:$0xf]
        %v1830 = vld [vmem:[%s804 + $0x34] sm:$0xf]
        %v1831 = vld [vmem:[%s804 + $0x38] sm:$0xf]
        %v1832 = vld [vmem:[%s804 + $0x3c] sm:$0xf]
        %v1833 = vld [vmem:[%s812] sm:$0x1]
        %v1835 = vlaneseq
        %v1836 = vshrl.u32 %v1835, 7
        %v1837 = vsub.s32 0, %v1836
        %v1838 = vrot.slane %v1833, %v1837
        %v1856 = vunpack.c.l.b16 %v1817
        %v1857 = vunpack.c.l.b16 %v1818
        %v1858 = vunpack.c.l.b16 %v1819
        %v1859 = vunpack.c.l.b16 %v1820
        %v1860 = vunpack.c.l.b16 %v1821
        %v1861 = vunpack.c.l.b16 %v1822
        %v1862 = vunpack.c.l.b16 %v1823
        %v1863 = vunpack.c.l.b16 %v1824
        %v1864 = vunpack.c.l.b16 %v1825
        %v1865 = vunpack.c.l.b16 %v1826
        %v1866 = vunpack.c.l.b16 %v1827
        %v1867 = vunpack.c.l.b16 %v1828
        %v1868 = vunpack.c.l.b16 %v1829
        %v1869 = vunpack.c.l.b16 %v1830
        %v1870 = vunpack.c.l.b16 %v1831
        %v1871 = vunpack.c.l.b16 %v1832
        %v1872 = vpack.c.b16 %v1857, %v1856
        %v1873 = vpack.c.b16 %v1859, %v1858
        %v1874 = vpack.c.b16 %v1861, %v1860
        %v1875 = vpack.c.b16 %v1863, %v1862
        %v1876 = vpack.c.b16 %v1865, %v1864
        %v1877 = vpack.c.b16 %v1867, %v1866
        %v1878 = vpack.c.b16 %v1869, %v1868
        %v1879 = vpack.c.b16 %v1871, %v1870
        %1888 = vmatprep.subr.bf16.mxu0 0
        %1889 = vmatpush1.bf16.msra.mxu0 %v1872
        %1890 = vmatprep.subr.bf16.mxu0 0
        %1891 = vmatpush1.bf16.msra.mxu0 %v1873
        %1892 = vmatprep.subr.bf16.mxu0 0
        %1893 = vmatpush1.bf16.msra.mxu0 %v1874
        %1894 = vmatprep.subr.bf16.mxu0 0
        %1895 = vmatpush1.bf16.msra.mxu0 %v1875
        %1896 = vmatprep.subr.bf16.mxu0 0
        %1897 = vmatpush1.bf16.msra.mxu0 %v1876
        %1898 = vmatprep.subr.bf16.mxu0 0
        %1899 = vmatpush1.bf16.msra.mxu0 %v1877
        %1900 = vmatprep.subr.bf16.mxu0 0
        %1901 = vmatpush1.bf16.msra.mxu0 %v1878
        %1902 = vmatprep.subr.bf16.mxu0 0
        %1903 = vmatpush1.bf16.msra.mxu0 %v1879
        %1904 = vmatprep.subr.bf16.mxu0 0
        %1905 = vmatpush1.bf16.msra.mxu0 0
        %1906 = vmatprep.subr.bf16.mxu0 0
        %1907 = vmatpush1.bf16.msra.mxu0 0
        %1908 = vmatprep.subr.bf16.mxu0 0
        %1909 = vmatpush1.bf16.msra.mxu0 0
        %1910 = vmatprep.subr.bf16.mxu0 0
        %1911 = vmatpush1.bf16.msra.mxu0 0
        %1912 = vmatprep.subr.bf16.mxu0 0
        %1913 = vmatpush1.bf16.msra.mxu0 0
        %1914 = vmatprep.subr.bf16.mxu0 0
        %1915 = vmatpush1.bf16.msra.mxu0 0
        %1916 = vmatprep.subr.bf16.mxu0 0
        %1917 = vmatpush1.bf16.msra.mxu0 0
        %1918 = vmatprep.subr.bf16.mxu0 0
        %1919 = vmatpush1.bf16.msra.mxu0 0
        %1920 = vmatprep.mubr.bf16.mxu0 0
        %1921 = vmatmul.mubr.bf16.gmra.mrb[0].mxu0 %v1816
        %v1922 = vpop.f32.mrb[0].mxu0
        %v1923 = vadd.f32 %v1838, %v1922
        %v1924 = vpop.f32.mrb[0].mxu0
        %v1925 = vpop.f32.mrb[0].mxu0
        %v1926 = vadd.f32 %v1838, %v1925
        %v1927 = vpop.f32.mrb[0].mxu0
        %1928 = vdwg.mxu0
        %v1929 = vadd.f32 %v981, %v1923
        %v1930 = vadd.f32 %v982, %v1926
        %v1931 = vld [vmem:[%s820] sm:$0x1]
        %v1932 = vld [vmem:[%s828] sm:$0x1]
        %1933 = vadd.xlane.f32.xlu0 %v1929
        %v1934 = vpop.xlane.xlu0 %1933
        %1935 = vadd.xlane.f32.xlu0 %v1930
        %v1936 = vpop.xlane.xlu0 %1935
        %v1937 = vmul.f32 %v1934, %v989
        %v1938 = vmul.f32 %v1936, %v989
        %v1939 = vsub.f32 %v1929, %v1937
        %v1940 = vsub.f32 %v1930, %v1938
        %v1941 = vmul.f32 %v1939, %v1939
        %v1942 = vmul.f32 %v1940, %v1940
        %1943 = vadd.xlane.f32.xlu0 %v1941
        %v1944 = vpop.xlane.xlu0 %1943
        %1945 = vadd.xlane.f32.xlu0 %v1942
        %v1946 = vpop.xlane.xlu0 %1945
        %v1947 = vmul.f32 %v1944, %v989
        %v1948 = vmul.f32 %v1946, %v989
        %v1949 = vadd.f32 %v1947, 1e-05
        %v1950 = vadd.f32 %v1948, 1e-05
        %v1951 = vrsqrt.pop %v1949
        %v1952 = vrsqrt.pop %v1950
        %v1953 = vmul.f32 %v1939, %v1951
        %v1954 = vmul.f32 %v1940, %v1952
        %v1956 = vlaneseq
        %v1957 = vshrl.u32 %v1956, 7
        %v1958 = vsub.s32 0, %v1957
        %v1959 = vrot.slane %v1931, %v1958
        %v1961 = vmul.f32 %v1953, %v1959
        %v1962 = vmul.f32 %v1954, %v1959
        %v1964 = vlaneseq
        %v1965 = vshrl.u32 %v1964, 7
        %v1966 = vsub.s32 0, %v1965
        %v1967 = vrot.slane %v1932, %v1966
        %v1969 = vadd.f32 %v1961, %v1967
        %v1970 = vadd.f32 %v1962, %v1967
        %v1971 = vpack.c.bf16 %v1970, %v1969
        %v1972 = vld [vmem:[%s837] sm:$0xff]
        %v1973 = vld [vmem:[%s837 + $0x8] sm:$0xff]
        %v1974 = vld [vmem:[%s837 + $0x10] sm:$0xff]
        %v1975 = vld [vmem:[%s837 + $0x18] sm:$0xff]
        %v1976 = vld [vmem:[%s837 + $0x20] sm:$0xff]
        %v1977 = vld [vmem:[%s837 + $0x28] sm:$0xff]
        %v1978 = vld [vmem:[%s837 + $0x30] sm:$0xff]
        %v1979 = vld [vmem:[%s837 + $0x38] sm:$0xff]
        %v1980 = vld [vmem:[%s837 + $0x40] sm:$0xff]
        %v1981 = vld [vmem:[%s837 + $0x48] sm:$0xff]
        %v1982 = vld [vmem:[%s837 + $0x50] sm:$0xff]
        %v1983 = vld [vmem:[%s837 + $0x58] sm:$0xff]
        %v1984 = vld [vmem:[%s837 + $0x60] sm:$0xff]
        %v1985 = vld [vmem:[%s837 + $0x68] sm:$0xff]
        %v1986 = vld [vmem:[%s837 + $0x70] sm:$0xff]
        %v1987 = vld [vmem:[%s837 + $0x78] sm:$0xff]
        %v1988 = vld [vmem:[%s846] sm:$0x3]
        %v1990 = vlaneseq
        %v1991 = vshrl.u32 %v1990, 7
        %v1992 = vsub.s32 0, %v1991
        %v1993 = vrot.slane %v1988, %v1992
        %v1994 = vlaneseq
        %v1995 = vshrl.u32 %v1994, 7
        %v1996 = vsub.s32 1, %v1995
        %v1997 = vrot.slane %v1988, %v1996
        %v2016 = vunpack.c.l.b16 %v1972
        %v2017 = vunpack.c.h.b16 %v1972
        %v2018 = vunpack.c.l.b16 %v1973
        %v2019 = vunpack.c.h.b16 %v1973
        %v2020 = vunpack.c.l.b16 %v1974
        %v2021 = vunpack.c.h.b16 %v1974
        %v2022 = vunpack.c.l.b16 %v1975
        %v2023 = vunpack.c.h.b16 %v1975
        %v2024 = vunpack.c.l.b16 %v1976
        %v2025 = vunpack.c.h.b16 %v1976
        %v2026 = vunpack.c.l.b16 %v1977
        %v2027 = vunpack.c.h.b16 %v1977
        %v2028 = vunpack.c.l.b16 %v1978
        %v2029 = vunpack.c.h.b16 %v1978
        %v2030 = vunpack.c.l.b16 %v1979
        %v2031 = vunpack.c.h.b16 %v1979
        %v2032 = vunpack.c.l.b16 %v1980
        %v2033 = vunpack.c.h.b16 %v1980
        %v2034 = vunpack.c.l.b16 %v1981
        %v2035 = vunpack.c.h.b16 %v1981
        %v2036 = vunpack.c.l.b16 %v1982
        %v2037 = vunpack.c.h.b16 %v1982
        %v2038 = vunpack.c.l.b16 %v1983
        %v2039 = vunpack.c.h.b16 %v1983
        %v2040 = vunpack.c.l.b16 %v1984
        %v2041 = vunpack.c.h.b16 %v1984
        %v2042 = vunpack.c.l.b16 %v1985
        %v2043 = vunpack.c.h.b16 %v1985
        %v2044 = vunpack.c.l.b16 %v1986
        %v2045 = vunpack.c.h.b16 %v1986
        %v2046 = vunpack.c.l.b16 %v1987
        %v2047 = vunpack.c.h.b16 %v1987
        %v2048 = vpack.c.b16 %v2018, %v2016
        %v2049 = vpack.c.b16 %v2019, %v2017
        %v2050 = vpack.c.b16 %v2022, %v2020
        %v2051 = vpack.c.b16 %v2023, %v2021
        %v2052 = vpack.c.b16 %v2026, %v2024
        %v2053 = vpack.c.b16 %v2027, %v2025
        %v2054 = vpack.c.b16 %v2030, %v2028
        %v2055 = vpack.c.b16 %v2031, %v2029
        %v2056 = vpack.c.b16 %v2034, %v2032
        %v2057 = vpack.c.b16 %v2035, %v2033
        %v2058 = vpack.c.b16 %v2038, %v2036
        %v2059 = vpack.c.b16 %v2039, %v2037
        %v2060 = vpack.c.b16 %v2042, %v2040
        %v2061 = vpack.c.b16 %v2043, %v2041
        %v2062 = vpack.c.b16 %v2046, %v2044
        %v2063 = vpack.c.b16 %v2047, %v2045
        %2080 = vmatprep.subr.bf16.mxu0 %v2049
        %2081 = vmatpush1.bf16.msra.mxu0 %v2048
        %2082 = vmatprep.subr.bf16.mxu0 %v2051
        %2083 = vmatpush1.bf16.msra.mxu0 %v2050
        %2084 = vmatprep.subr.bf16.mxu0 %v2053
        %2085 = vmatpush1.bf16.msra.mxu0 %v2052
        %2086 = vmatprep.subr.bf16.mxu0 %v2055
        %2087 = vmatpush1.bf16.msra.mxu0 %v2054
        %2088 = vmatprep.subr.bf16.mxu0 %v2057
        %2089 = vmatpush1.bf16.msra.mxu0 %v2056
        %2090 = vmatprep.subr.bf16.mxu0 %v2059
        %2091 = vmatpush1.bf16.msra.mxu0 %v2058
        %2092 = vmatprep.subr.bf16.mxu0 %v2061
        %2093 = vmatpush1.bf16.msra.mxu0 %v2060
        %2094 = vmatprep.subr.bf16.mxu0 %v2063
        %2095 = vmatpush1.bf16.msra.mxu0 %v2062
        %2096 = vmatprep.subr.bf16.mxu0 0
        %2097 = vmatpush1.bf16.msra.mxu0 0
        %2098 = vmatprep.subr.bf16.mxu0 0
        %2099 = vmatpush1.bf16.msra.mxu0 0
        %2100 = vmatprep.subr.bf16.mxu0 0
        %2101 = vmatpush1.bf16.msra.mxu0 0
        %2102 = vmatprep.subr.bf16.mxu0 0
        %2103 = vmatpush1.bf16.msra.mxu0 0
        %2104 = vmatprep.subr.bf16.mxu0 0
        %2105 = vmatpush1.bf16.msra.mxu0 0
        %2106 = vmatprep.subr.bf16.mxu0 0
        %2107 = vmatpush1.bf16.msra.mxu0 0
        %2108 = vmatprep.subr.bf16.mxu0 0
        %2109 = vmatpush1.bf16.msra.mxu0 0
        %2110 = vmatprep.subr.bf16.mxu0 0
        %2111 = vmatpush1.bf16.msra.mxu0 0
        %2112 = vmatprep.mubr.bf16.mxu0 0
        %2113 = vmatmul.mubr.bf16.gmra.mrb[0].mxu0 %v1971
        %v2114 = vpop.f32.mrb[0].mxu0
        %v2115 = vadd.f32 %v1993, %v2114
        %v2116 = vpop.f32.mrb[0].mxu0
        %v2117 = vadd.f32 %v1997, %v2116
        %v2118 = vpop.f32.mrb[0].mxu0
        %v2119 = vadd.f32 %v1993, %v2118
        %v2120 = vpop.f32.mrb[0].mxu0
        %v2121 = vadd.f32 %v1997, %v2120
        %2122 = vdwg.mxu0
        %v2123 = vmul.f32 %v2115, 0.5
        %v2124 = vmul.f32 %v2117, 0.5
        %v2125 = vmul.f32 %v2119, 0.5
        %v2126 = vmul.f32 %v2121, 0.5
        %v2127 = vmul.f32 %v2115, 0.044715
        %v2128 = vmul.f32 %v2117, 0.044715
        %v2129 = vmul.f32 %v2119, 0.044715
        %v2130 = vmul.f32 %v2121, 0.044715
        %v2131 = vmul.f32 %v2127, %v2115
        %v2132 = vmul.f32 %v2128, %v2117
        %v2133 = vmul.f32 %v2129, %v2119
        %v2134 = vmul.f32 %v2130, %v2121
        %v2135 = vmul.f32 %v2131, %v2115
        %v2136 = vmul.f32 %v2132, %v2117
        %v2137 = vmul.f32 %v2133, %v2119
        %v2138 = vmul.f32 %v2134, %v2121
        %v2139 = vadd.f32 %v2115, %v2135
        %v2140 = vadd.f32 %v2117, %v2136
        %v2141 = vadd.f32 %v2119, %v2137
        %v2142 = vadd.f32 %v2121, %v2138
        %v2143 = vmul.f32 %v2139, 0.7978846
        %v2144 = vmul.f32 %v2140, 0.7978846
        %v2145 = vmul.f32 %v2141, 0.7978846
        %v2146 = vmul.f32 %v2142, 0.7978846
        %v2147 = vtanh.pop %v2143
        %v2148 = vtanh.pop %v2144
        %v2149 = vtanh.pop %v2145
        %v2150 = vtanh.pop %v2146
        %v2151 = vadd.f32 %v2147, 1.0
        %v2152 = vadd.f32 %v2148, 1.0
        %v2153 = vadd.f32 %v2149, 1.0
        %v2154 = vadd.f32 %v2150, 1.0
        %v2155 = vmul.f32 %v2123, %v2151
        %v2156 = vmul.f32 %v2124, %v2152
        %v2157 = vmul.f32 %v2125, %v2153
        %v2158 = vmul.f32 %v2126, %v2154
        %v2159 = vpack.c.bf16 %v2157, %v2155
        %v2160 = vpack.c.bf16 %v2158, %v2156
        %v2161 = vld [vmem:[%s855] sm:$0xf]
        %v2162 = vld [vmem:[%s855 + $0x4] sm:$0xf]
        %v2163 = vld [vmem:[%s855 + $0x8] sm:$0xf]
        %v2164 = vld [vmem:[%s855 + $0xc] sm:$0xf]
        %v2165 = vld [vmem:[%s855 + $0x10] sm:$0xf]
        %v2166 = vld [vmem:[%s855 + $0x14] sm:$0xf]
        %v2167 = vld [vmem:[%s855 + $0x18] sm:$0xf]
        %v2168 = vld [vmem:[%s855 + $0x1c] sm:$0xf]
        %v2169 = vld [vmem:[%s855 + $0x20] sm:$0xf]
        %v2170 = vld [vmem:[%s855 + $0x24] sm:$0xf]
        %v2171 = vld [vmem:[%s855 + $0x28] sm:$0xf]
        %v2172 = vld [vmem:[%s855 + $0x2c] sm:$0xf]
        %v2173 = vld [vmem:[%s855 + $0x30] sm:$0xf]
        %v2174 = vld [vmem:[%s855 + $0x34] sm:$0xf]
        %v2175 = vld [vmem:[%s855 + $0x38] sm:$0xf]
        %v2176 = vld [vmem:[%s855 + $0x3c] sm:$0xf]
        %v2177 = vld [vmem:[%s855 + $0x40] sm:$0xf]
        %v2178 = vld [vmem:[%s855 + $0x44] sm:$0xf]
        %v2179 = vld [vmem:[%s855 + $0x48] sm:$0xf]
        %v2180 = vld [vmem:[%s855 + $0x4c] sm:$0xf]
        %v2181 = vld [vmem:[%s855 + $0x50] sm:$0xf]
        %v2182 = vld [vmem:[%s855 + $0x54] sm:$0xf]
        %v2183 = vld [vmem:[%s855 + $0x58] sm:$0xf]
        %v2184 = vld [vmem:[%s855 + $0x5c] sm:$0xf]
        %v2185 = vld [vmem:[%s855 + $0x60] sm:$0xf]
        %v2186 = vld [vmem:[%s855 + $0x64] sm:$0xf]
        %v2187 = vld [vmem:[%s855 + $0x68] sm:$0xf]
        %v2188 = vld [vmem:[%s855 + $0x6c] sm:$0xf]
        %v2189 = vld [vmem:[%s855 + $0x70] sm:$0xf]
        %v2190 = vld [vmem:[%s855 + $0x74] sm:$0xf]
        %v2191 = vld [vmem:[%s855 + $0x78] sm:$0xf]
        %v2192 = vld [vmem:[%s855 + $0x7c] sm:$0xf]
        %v2193 = vld [vmem:[%s863] sm:$0x1]
        %v2195 = vlaneseq
        %v2196 = vshrl.u32 %v2195, 7
        %v2197 = vsub.s32 0, %v2196
        %v2198 = vrot.slane %v2193, %v2197
        %v2232 = vunpack.c.l.b16 %v2161
        %v2233 = vunpack.c.l.b16 %v2162
        %v2234 = vunpack.c.l.b16 %v2163
        %v2235 = vunpack.c.l.b16 %v2164
        %v2236 = vunpack.c.l.b16 %v2165
        %v2237 = vunpack.c.l.b16 %v2166
        %v2238 = vunpack.c.l.b16 %v2167
        %v2239 = vunpack.c.l.b16 %v2168
        %v2240 = vunpack.c.l.b16 %v2169
        %v2241 = vunpack.c.l.b16 %v2170
        %v2242 = vunpack.c.l.b16 %v2171
        %v2243 = vunpack.c.l.b16 %v2172
        %v2244 = vunpack.c.l.b16 %v2173
        %v2245 = vunpack.c.l.b16 %v2174
        %v2246 = vunpack.c.l.b16 %v2175
        %v2247 = vunpack.c.l.b16 %v2176
        %v2248 = vunpack.c.l.b16 %v2177
        %v2249 = vunpack.c.l.b16 %v2178
        %v2250 = vunpack.c.l.b16 %v2179
        %v2251 = vunpack.c.l.b16 %v2180
        %v2252 = vunpack.c.l.b16 %v2181
        %v2253 = vunpack.c.l.b16 %v2182
        %v2254 = vunpack.c.l.b16 %v2183
        %v2255 = vunpack.c.l.b16 %v2184
        %v2256 = vunpack.c.l.b16 %v2185
        %v2257 = vunpack.c.l.b16 %v2186
        %v2258 = vunpack.c.l.b16 %v2187
        %v2259 = vunpack.c.l.b16 %v2188
        %v2260 = vunpack.c.l.b16 %v2189
        %v2261 = vunpack.c.l.b16 %v2190
        %v2262 = vunpack.c.l.b16 %v2191
        %v2263 = vunpack.c.l.b16 %v2192
        %v2264 = vpack.c.b16 %v2233, %v2232
        %v2265 = vpack.c.b16 %v2235, %v2234
        %v2266 = vpack.c.b16 %v2237, %v2236
        %v2267 = vpack.c.b16 %v2239, %v2238
        %v2268 = vpack.c.b16 %v2241, %v2240
        %v2269 = vpack.c.b16 %v2243, %v2242
        %v2270 = vpack.c.b16 %v2245, %v2244
        %v2271 = vpack.c.b16 %v2247, %v2246
        %v2272 = vpack.c.b16 %v2249, %v2248
        %v2273 = vpack.c.b16 %v2251, %v2250
        %v2274 = vpack.c.b16 %v2253, %v2252
        %v2275 = vpack.c.b16 %v2255, %v2254
        %v2276 = vpack.c.b16 %v2257, %v2256
        %v2277 = vpack.c.b16 %v2259, %v2258
        %v2278 = vpack.c.b16 %v2261, %v2260
        %v2279 = vpack.c.b16 %v2263, %v2262
        %2296 = vmatprep.subr.bf16.mxu0 0
        %2297 = vmatpush1.bf16.msra.mxu0 %v2264
        %2298 = vmatprep.subr.bf16.mxu0 0
        %2299 = vmatpush1.bf16.msra.mxu0 %v2265
        %2300 = vmatprep.subr.bf16.mxu0 0
        %2301 = vmatpush1.bf16.msra.mxu0 %v2266
        %2302 = vmatprep.subr.bf16.mxu0 0
        %2303 = vmatpush1.bf16.msra.mxu0 %v2267
        %2304 = vmatprep.subr.bf16.mxu0 0
        %2305 = vmatpush1.bf16.msra.mxu0 %v2268
        %2306 = vmatprep.subr.bf16.mxu0 0
        %2307 = vmatpush1.bf16.msra.mxu0 %v2269
        %2308 = vmatprep.subr.bf16.mxu0 0
        %2309 = vmatpush1.bf16.msra.mxu0 %v2270
        %2310 = vmatprep.subr.bf16.mxu0 0
        %2311 = vmatpush1.bf16.msra.mxu0 %v2271
        %2312 = vmatprep.subr.bf16.mxu0 0
        %2313 = vmatpush1.bf16.msra.mxu0 %v2272
        %2314 = vmatprep.subr.bf16.mxu0 0
        %2315 = vmatpush1.bf16.msra.mxu0 %v2273
        %2316 = vmatprep.subr.bf16.mxu0 0
        %2317 = vmatpush1.bf16.msra.mxu0 %v2274
        %2318 = vmatprep.subr.bf16.mxu0 0
        %2319 = vmatpush1.bf16.msra.mxu0 %v2275
        %2320 = vmatprep.subr.bf16.mxu0 0
        %2321 = vmatpush1.bf16.msra.mxu0 %v2276
        %2322 = vmatprep.subr.bf16.mxu0 0
        %2323 = vmatpush1.bf16.msra.mxu0 %v2277
        %2324 = vmatprep.subr.bf16.mxu0 0
        %2325 = vmatpush1.bf16.msra.mxu0 %v2278
        %2326 = vmatprep.subr.bf16.mxu0 0
        %2327 = vmatpush1.bf16.msra.mxu0 %v2279
        %2328 = vmatprep.mubr.bf16.mxu0 %v2160
        %2329 = vmatmul.mubr.bf16.gmra.mrb[0].mxu0 %v2159
        %v2330 = vpop.f32.mrb[0].mxu0
        %v2331 = vadd.f32 %v2198, %v2330
        %v2332 = vpop.f32.mrb[0].mxu0
        %v2333 = vpop.f32.mrb[0].mxu0
        %v2334 = vadd.f32 %v2198, %v2333
        %v2335 = vpop.f32.mrb[0].mxu0
        %2336 = vdwg.mxu0
        %v2337 = vadd.f32 %v1929, %v2331
        %v2338 = vadd.f32 %v1930, %v2334
        %p2339 = scmp.eq.s32.totalorder %s56, 1
        // Predicated region
        $region145: #{tpu_custom_call.1} parent=79 // pred_check
          %p2340 = pneg %p2339
        $region146: #{tpu_custom_call.1} parent=79 // pred_check_branch
          %2342 = sbr.rel (%p2340) target = $region148
        $region147: #{tpu_custom_call.1} parent=79 // pred_region
          %v2343 = vld [vmem:[#allocation24] sm:$0x1]
          %v2344 = vld [vmem:[#allocation26] sm:$0x1]
          %2345 = vadd.xlane.f32.xlu0 %v2337
          %v2346 = vpop.xlane.xlu0 %2345
          %2347 = vadd.xlane.f32.xlu0 %v2338
          %v2348 = vpop.xlane.xlu0 %2347
          %v2349 = vmul.f32 %v2346, %v989
          %v2350 = vmul.f32 %v2348, %v989
          %v2351 = vsub.f32 %v2337, %v2349
          %v2352 = vsub.f32 %v2338, %v2350
          %v2353 = vmul.f32 %v2351, %v2351
          %v2354 = vmul.f32 %v2352, %v2352
          %2355 = vadd.xlane.f32.xlu0 %v2353
          %v2356 = vpop.xlane.xlu0 %2355
          %2357 = vadd.xlane.f32.xlu0 %v2354
          %v2358 = vpop.xlane.xlu0 %2357
          %v2359 = vmul.f32 %v2356, %v989
          %v2360 = vmul.f32 %v2358, %v989
          %v2361 = vadd.f32 %v2359, 1e-05
          %v2362 = vadd.f32 %v2360, 1e-05
          %v2363 = vrsqrt.pop %v2361
          %v2364 = vrsqrt.pop %v2362
          %v2365 = vmul.f32 %v2351, %v2363
          %v2366 = vmul.f32 %v2352, %v2364
          %v2368 = vlaneseq
          %v2369 = vshrl.u32 %v2368, 7
          %v2370 = vsub.s32 0, %v2369
          %v2371 = vrot.slane %v2343, %v2370
          %v2373 = vmul.f32 %v2365, %v2371
          %v2374 = vmul.f32 %v2366, %v2371
          %v2376 = vlaneseq
          %v2377 = vshrl.u32 %v2376, 7
          %v2378 = vsub.s32 0, %v2377
          %v2379 = vrot.slane %v2344, %v2378
          %v2381 = vadd.f32 %v2373, %v2379
          %v2382 = vadd.f32 %v2374, %v2379
          %2383 = vst [vmem:[%s971] sm:$0xff] %v2381
          %2384 = vst [vmem:[%s971 + $0x8] sm:$0xff] %v2382
        $region148: #{tpu_custom_call.1} parent=79 // pred_fallthru
          _
        %p2385 = scmp.lt.s32.totalorder %s56, 1
        // Predicated region
        $region149: #{tpu_custom_call.1} parent=79 // pred_check
          %p2386 = pneg %p2385
        $region150: #{tpu_custom_call.1} parent=79 // pred_check_branch
          %2388 = sbr.rel (%p2386) target = $region152
        $region151: #{tpu_custom_call.1} parent=79 // pred_region
          %2389 = vst [vmem:[%s971] sm:$0xff] %v2337
          %2390 = vst [vmem:[%s971 + $0x8] sm:$0xff] %v2338
        $region152: #{tpu_custom_call.1} parent=79 // pred_fallthru
          _
        %s2391 = sand.u32 %s451, 1
        %s2392 = scalar_lea.sflag [#allocation5], %s2391
        %s2393 = sand.u32 %s451, 1
        %s2394 = smul.addr %s2393, 16
        %s2395 = scalar_lea.vmem [#allocation27], %s2394
        // Predicated region
        $region153: #{tpu_custom_call.1} parent=79 // pred_check
          %p2396 = pneg %p461
        $region154: #{tpu_custom_call.1} parent=79 // pred_check_branch
          %2398 = sbr.rel (%p2396) target = $region156
        $region155: #{tpu_custom_call.1} parent=79 // pred_region
          %s2400 = ssub.s32 256, 256
          %2401 = vsyncadd %s2392, %s2400
          %s2402 = smul.addr %s55, 2
          %s2403 = smul.addr %s2402, 128
          %s2404 = scalar_lea.hbm %s15, %s2403
          %s2405 = sshll.u32 %s2395, 4
          %s2406 = int_to_ptr.vmem [resolvable:$true] %s2405
          %2411 = dma.vmem_to_hbm [thread:$0]  %s2406, 256, %s2404, %s2392, 128, 128, 8
        $region156: #{tpu_custom_call.1} parent=79 // pred_fallthru
          _
      $region80: #{tpu_custom_call.1} parent=5 // pred_fallthru
        _
      %p2412 = scmp.le.s32.totalorder 2, %s46
      // Predicated region
      $region157: #{tpu_custom_call.1} parent=5 // pred_check
        %p2413 = pneg %p2412
      $region158: #{tpu_custom_call.1} parent=5 // pred_check_branch
        %2415 = sbr.rel (%p2413) target = $region160
      $region159: #{tpu_custom_call.1} parent=5 // pred_region
        %s2416 = ssub.s32 %s46, 2
        // Predicated region
        $region161: #{tpu_custom_call.1} parent=159 // pred_check
          %p2417 = pneg %p467
        $region162: #{tpu_custom_call.1} parent=159 // pred_check_branch
          %2419 = sbr.rel (%p2417) target = $region164
        $region163: #{tpu_custom_call.1} parent=159 // pred_region
          %s2420 = sand.u32 %s452, 1
          %s2421 = scalar_lea.sflag [#allocation5], %s2420
          %s2422 = sand.u32 %s452, 1
          %s2423 = smul.addr %s2422, 16
          %s2424 = scalar_lea.vmem [#allocation27], %s2423
          %2425 = dma.done %s2421, 256
        $region164: #{tpu_custom_call.1} parent=159 // pred_fallthru
          _
      $region160: #{tpu_custom_call.1} parent=5 // pred_fallthru
        _
    $region6: #{tpu_custom_call.1} parent=1 // loop_footer
      %s50 = sadd.s32 1, %s46
    $region7: #{tpu_custom_call.1} parent=1 // loop_footer_branch
      %45 = sbr.rel target = $region3
    $region8: #{tpu_custom_call.1} parent=1 // loop_exit
      _
    %2426 = vsyncpa [#allocation4], 1
    %s2427 = scalar_lea.sflag [#allocation4], 1
    %2428 = vsyncpa %s2427, 1
    %2429 = vsyncpa [#allocation7], 1
    %s2430 = scalar_lea.sflag [#allocation7], 1
    %2431 = vsyncpa %s2430, 1
    %2432 = vsyncpa [#allocation10], 1
    %s2433 = scalar_lea.sflag [#allocation10], 1
    %2434 = vsyncpa %s2433, 1
    %2435 = vsyncpa [#allocation13], 1
    %s2436 = scalar_lea.sflag [#allocation13], 1
    %2437 = vsyncpa %s2436, 1
    %2438 = vsyncpa [#allocation16], 1
    %s2439 = scalar_lea.sflag [#allocation16], 1
    %2440 = vsyncpa %s2439, 1
    %2441 = vsyncpa [#allocation19], 1
    %s2442 = scalar_lea.sflag [#allocation19], 1
    %2443 = vsyncpa %s2442, 1
    %2444 = vsyncpa [#allocation22], 1
    %s2445 = scalar_lea.sflag [#allocation22], 1
    %2446 = vsyncpa %s2445, 1
    %2447 = vsyncpa [#allocation25], 1
    %2448 = vsyncpa [#allocation5], 1
    %s2449 = scalar_lea.sflag [#allocation5], 1
    %2450 = vsyncpa %s2449, 1

</llo_original>
